<compile_context>
chip_gen: v7x
topology: tpu7x:2x2x1
jax: 0.10.0
libtpu: 0.0.40
codegen_flags: <defaults>
</compile_context>

<pallas_src>
import functools
import math

import jax
import jax.numpy as jnp
from jax import lax
from jax.experimental import pallas as pl
from jax.experimental.pallas import tpu as pltpu


# ----------------------------- Fused per-batch MHA kernel -------------------
def _mha_fused_kernel(xq_ref, xk_ref, xv_ref, wq_ref, wk_ref, wv_ref, wfc_ref,
                      *out_refs, n_heads, d_k, write_attn):
    out_ref = out_refs[0]
    attn_ref = out_refs[1] if write_attn else None

    xq = xq_ref[0]          # [L, D]
    xk = xk_ref[0]
    xv = xv_ref[0]

    # Head-fused projections: one wide matmul per input, N = H*d_k = d_model.
    q_all = jnp.dot(xq, wq_ref[...], preferred_element_type=jnp.float32)
    k_all = jnp.dot(xk, wk_ref[...], preferred_element_type=jnp.float32)
    v_all = jnp.dot(xv, wv_ref[...], preferred_element_type=jnp.float32)

    inv_sqrt_dk = 1.0 / math.sqrt(d_k)

    ctx_parts = []
    for h in range(n_heads):            # static unroll over heads
        lo = h * d_k
        q_h = q_all[:, lo:lo + d_k]     # [L, d_k]
        k_h = k_all[:, lo:lo + d_k]
        v_h = v_all[:, lo:lo + d_k]

        # scores = q_h @ k_h^T without an explicit transpose (contract last dims)
        s = lax.dot_general(q_h, k_h, (((1,), (1,)), ((), ())),
                            preferred_element_type=jnp.float32)
        s = s * inv_sqrt_dk             # [L, L]

        # softmax(dim=-1), max-subtracted, stats in f32
        m = jnp.max(s, axis=-1, keepdims=True)
        e = jnp.exp(s - m)
        denom = jnp.sum(e, axis=-1, keepdims=True)
        p = e * pl.reciprocal(denom, approx=True)
        # TODO(synk): dropout(p=0.1) on p is identity (eval mode).

        if attn_ref is not None:
            attn_ref[0, h] = p

        # context for this head, concatenated lane-dense below
        ctx_parts.append(jnp.dot(p, v_h, preferred_element_type=jnp.float32))

    ctx = jnp.concatenate(ctx_parts, axis=-1)        # [L, H*d_k]  lane-dense

    # fc (torch nn.Linear, no bias): contract ctx last dim with W_fc's 'in' dim.
    out = lax.dot_general(ctx, wfc_ref[...], (((1,), (1,)), ((), ())),
                          preferred_element_type=jnp.float32)
    out = out + xq                                   # residual (input_Q)

    # LayerNorm(d_model): freshly-constructed -> weight=1, bias=0, eps=1e-5.
    mean = jnp.mean(out, axis=-1, keepdims=True)
    var = jnp.mean(jnp.square(out - mean), axis=-1, keepdims=True)
    out_ref[0] = (out - mean) * lax.rsqrt(var + 1e-5)


# ----------------------------- Wrapper ---------------------------------------
def multi_head_attention(input_Q, input_K, input_V, W_Q, W_K, W_V, W_fc,
                         *, return_attn=True):
    """
    input_Q/K/V: [B, L, d_model] float32
    W_Q/K/V:     [H, d_model, d_k]
    W_fc:        [d_model, d_model]   (torch nn.Linear weight, (out, in))
    returns (output [B, L, d_model], attn [B, H, L, L]) or just output if
    return_attn=False.
    """
    B, L, D = input_Q.shape
    H, _, d_k = W_Q.shape
    assert H * d_k == D, "d_model must equal n_heads * d_k"

    # Fold the head axis into the weight output dim so each projection is one
    # lane-dense [L, D] @ [D, H*d_k] matmul (tiny one-time weight reshape).
    wq_flat = jnp.transpose(W_Q, (1, 0, 2)).reshape(D, H * d_k)
    wk_flat = jnp.transpose(W_K, (1, 0, 2)).reshape(D, H * d_k)
    wv_flat = jnp.transpose(W_V, (1, 0, 2)).reshape(D, H * d_k)

    out_shape = (jax.ShapeDtypeStruct((B, L, D), jnp.float32),)
    out_specs = (pl.BlockSpec((1, L, D), lambda b: (b, 0, 0)),)
    if return_attn:
        out_shape = out_shape + (jax.ShapeDtypeStruct((B, H, L, L),
                                                      jnp.float32),)
        out_specs = out_specs + (pl.BlockSpec((1, H, L, L),
                                              lambda b: (b, 0, 0, 0)),)

    # Advisory cost estimate (QKV proj + scores + PV + fc; exp/recip/rsqrt).
    flops = 8 * B * L * D * D + 4 * B * L * L * D
    transcendentals = B * H * L * L + B * H * L + B * L
    bytes_accessed = 4 * (4 * B * L * D + 4 * D * D
                          + (B * H * L * L if return_attn else 0))

    kernel = functools.partial(_mha_fused_kernel, n_heads=H, d_k=d_k,
                               write_attn=return_attn)

    results = pl.pallas_call(
        kernel,
        out_shape=out_shape,
        grid_spec=pltpu.PrefetchScalarGridSpec(
            num_scalar_prefetch=0,
            grid=(B,),
            in_specs=[
                pl.BlockSpec((1, L, D), lambda b: (b, 0, 0)),      # input_Q
                pl.BlockSpec((1, L, D), lambda b: (b, 0, 0)),      # input_K
                pl.BlockSpec((1, L, D), lambda b: (b, 0, 0)),      # input_V
                pl.BlockSpec((D, H * d_k), lambda b: (0, 0)),      # W_Q fused
                pl.BlockSpec((D, H * d_k), lambda b: (0, 0)),      # W_K fused
                pl.BlockSpec((D, H * d_k), lambda b: (0, 0)),      # W_V fused
                pl.BlockSpec((D, D), lambda b: (0, 0)),            # W_fc (out,in)
            ],
            out_specs=out_specs,
        ),
        compiler_params=pltpu.CompilerParams(
            dimension_semantics=("parallel",)),
        cost_estimate=pl.CostEstimate(
            flops=flops, transcendentals=transcendentals,
            bytes_accessed=bytes_accessed),
    )(input_Q, input_K, input_V, wq_flat, wk_flat, wv_flat, W_fc)

    if return_attn:
        output, attn = results
        return output, attn
    (output,) = results
    return output


# ----------------------------- Pure-JAX reference (for sanity check) --------
def _reference(input_Q, input_K, input_V, W_Q, W_K, W_V, W_fc):
    d_k = W_Q.shape[-1]
    Q = jnp.einsum("bld,hdk->bhlk", input_Q, W_Q)
    K = jnp.einsum("bld,hdk->bhlk", input_K, W_K)
    V = jnp.einsum("bld,hdk->bhlk", input_V, W_V)
    scores = jnp.einsum("bhqk,bhmk->bhqm", Q, K) / jnp.sqrt(jnp.float32(d_k))
    attn = jax.nn.softmax(scores, axis=-1)
    ctx = jnp.einsum("bhqm,bhmk->bhqk", attn, V)
    B, H, L, dk = ctx.shape
    ctx_flat = jnp.transpose(ctx, (0, 2, 1, 3)).reshape(B, L, H * dk)
    out = ctx_flat @ W_fc.T + input_Q
    mean = jnp.mean(out, axis=-1, keepdims=True)
    var = jnp.mean((out - mean) ** 2, axis=-1, keepdims=True)
    return (out - mean) / jnp.sqrt(var + 1e-5), attn


# ----------------------------- Main -----------------------------------------
if __name__ == "__main__":
    B, L, d_model, n_heads = 2, 8, 32, 4
    d_k = d_model // n_heads

    key = jax.random.PRNGKey(0)
    k1, k2, k3, k4, k5, k6, k7 = jax.random.split(key, 7)

    # xavier_uniform_(gain=1.414) bounds for [H, d_model, d_k]
    gain = 1.414
    bound_w = gain * math.sqrt(6.0 / (d_model * d_k + n_heads * d_k))
    W_Q = jax.random.uniform(k1, (n_heads, d_model, d_k), jnp.float32,
                             -bound_w, bound_w)
    W_K = jax.random.uniform(k2, (n_heads, d_model, d_k), jnp.float32,
                             -bound_w, bound_w)
    W_V = jax.random.uniform(k3, (n_heads, d_model, d_k), jnp.float32,
                             -bound_w, bound_w)
    # nn.Linear default bound
    bound_fc = 1.0 / math.sqrt(d_model)
    W_fc = jax.random.uniform(k4, (d_model, d_model), jnp.float32,
                              -bound_fc, bound_fc)

    input_Q = jax.random.normal(k5, (B, L, d_model), jnp.float32)
    input_K = jax.random.normal(k6, (B, L, d_model), jnp.float32)
    input_V = jax.random.normal(k7, (B, L, d_model), jnp.float32)

    output, attn = multi_head_attention(input_Q, input_K, input_V,
                                        W_Q, W_K, W_V, W_fc)
    jax.block_until_ready((output, attn))

    ref_out, ref_attn = _reference(input_Q, input_K, input_V,
                                   W_Q, W_K, W_V, W_fc)
    assert output.shape == (B, L, d_model)
    assert attn.shape == (B, n_heads, L, L)
    # Tolerances account for the EUP approximate reciprocal in the softmax.
    assert jnp.allclose(attn, ref_attn, atol=2e-3, rtol=2e-3)
    assert jnp.allclose(output, ref_out, atol=5e-3, rtol=5e-3)

    print("KERNEL_OK")
</pallas_src>

<mosaic_0001>
module attributes {stable_mosaic.version = 11 : i64} {
  func.func @_mha_fused_kernel(%arg0: i32, %arg1: memref<1x8x32xf32, #tpu.memory_space<vmem>>, %arg2: memref<1x8x32xf32, #tpu.memory_space<vmem>>, %arg3: memref<1x8x32xf32, #tpu.memory_space<vmem>>, %arg4: memref<32x32xf32, #tpu.memory_space<vmem>>, %arg5: memref<32x32xf32, #tpu.memory_space<vmem>>, %arg6: memref<32x32xf32, #tpu.memory_space<vmem>>, %arg7: memref<32x32xf32, #tpu.memory_space<vmem>>, %arg8: memref<1x8x32xf32, #tpu.memory_space<vmem>>, %arg9: memref<1x4x8x8xf32, #tpu.memory_space<vmem>>) attributes {dimension_semantics = [#tpu.dimension_semantics<parallel>], iteration_bounds = array<i64: 2>, scalar_prefetch = 0 : i64, scratch_operands = 0 : i64, tpu.core_type = #tpu.core_type<tc>, window_params = [{transform_indices = @transform_0, window_bounds = array<i64: 1, 8, 32>}, {transform_indices = @transform_1, window_bounds = array<i64: 1, 8, 32>}, {transform_indices = @transform_2, window_bounds = array<i64: 1, 8, 32>}, {pipeline_mode = #tpu.pipeline_mode<synchronous>, transform_indices = @transform_3, window_bounds = array<i64: 32, 32>}, {pipeline_mode = #tpu.pipeline_mode<synchronous>, transform_indices = @transform_4, window_bounds = array<i64: 32, 32>}, {pipeline_mode = #tpu.pipeline_mode<synchronous>, transform_indices = @transform_5, window_bounds = array<i64: 32, 32>}, {pipeline_mode = #tpu.pipeline_mode<synchronous>, transform_indices = @transform_6, window_bounds = array<i64: 32, 32>}, {transform_indices = @transform_7, window_bounds = array<i64: 1, 8, 32>}, {transform_indices = @transform_8, window_bounds = array<i64: 1, 4, 8, 8>}]} {
    %c0 = arith.constant 0 : index
    %c0_0 = arith.constant 0 : index
    %c0_1 = arith.constant 0 : index
    %0 = vector.load %arg1[%c0, %c0_0, %c0_1] : memref<1x8x32xf32, #tpu.memory_space<vmem>>, vector<1x8x32xf32>
    %1 = vector.shape_cast %0 : vector<1x8x32xf32> to vector<8x32xf32>
    %c0_2 = arith.constant 0 : index
    %c0_3 = arith.constant 0 : index
    %c0_4 = arith.constant 0 : index
    %2 = vector.load %arg2[%c0_2, %c0_3, %c0_4] : memref<1x8x32xf32, #tpu.memory_space<vmem>>, vector<1x8x32xf32>
    %3 = vector.shape_cast %2 : vector<1x8x32xf32> to vector<8x32xf32>
    %c0_5 = arith.constant 0 : index
    %c0_6 = arith.constant 0 : index
    %c0_7 = arith.constant 0 : index
    %4 = vector.load %arg3[%c0_5, %c0_6, %c0_7] : memref<1x8x32xf32, #tpu.memory_space<vmem>>, vector<1x8x32xf32>
    %5 = vector.shape_cast %4 : vector<1x8x32xf32> to vector<8x32xf32>
    %c0_8 = arith.constant 0 : index
    %c0_9 = arith.constant 0 : index
    %6 = vector.load %arg4[%c0_8, %c0_9] : memref<32x32xf32, #tpu.memory_space<vmem>>, vector<32x32xf32>
    %cst = arith.constant dense<0.000000e+00> : vector<8x32xf32>
    %7 = tpu.matmul %1, %6, %cst {dimension_numbers = #tpu.dot_dimension_numbers<[1], [0], [0], [1], [0, 0, 1, 1], [], []>} : vector<8x32xf32>, vector<32x32xf32>, vector<8x32xf32> -> vector<8x32xf32>
    %c0_10 = arith.constant 0 : index
    %c0_11 = arith.constant 0 : index
    %8 = vector.load %arg5[%c0_10, %c0_11] : memref<32x32xf32, #tpu.memory_space<vmem>>, vector<32x32xf32>
    %cst_12 = arith.constant dense<0.000000e+00> : vector<8x32xf32>
    %9 = tpu.matmul %3, %8, %cst_12 {dimension_numbers = #tpu.dot_dimension_numbers<[1], [0], [0], [1], [0, 0, 1, 1], [], []>} : vector<8x32xf32>, vector<32x32xf32>, vector<8x32xf32> -> vector<8x32xf32>
    %c0_13 = arith.constant 0 : index
    %c0_14 = arith.constant 0 : index
    %10 = vector.load %arg6[%c0_13, %c0_14] : memref<32x32xf32, #tpu.memory_space<vmem>>, vector<32x32xf32>
    %cst_15 = arith.constant dense<0.000000e+00> : vector<8x32xf32>
    %11 = tpu.matmul %5, %10, %cst_15 {dimension_numbers = #tpu.dot_dimension_numbers<[1], [0], [0], [1], [0, 0, 1, 1], [], []>} : vector<8x32xf32>, vector<32x32xf32>, vector<8x32xf32> -> vector<8x32xf32>
    %12 = vector.extract_strided_slice %7 {offsets = [0, 0], sizes = [8, 8], strides = [1, 1]} : vector<8x32xf32> to vector<8x8xf32>
    %13 = vector.extract_strided_slice %9 {offsets = [0, 0], sizes = [8, 8], strides = [1, 1]} : vector<8x32xf32> to vector<8x8xf32>
    %14 = vector.extract_strided_slice %11 {offsets = [0, 0], sizes = [8, 8], strides = [1, 1]} : vector<8x32xf32> to vector<8x8xf32>
    %cst_16 = arith.constant dense<0.000000e+00> : vector<8x8xf32>
    %15 = tpu.matmul %12, %13, %cst_16 {dimension_numbers = #tpu.dot_dimension_numbers<[1], [1], [0], [0], [0, 0, 1, 0], [], []>} : vector<8x8xf32>, vector<8x8xf32>, vector<8x8xf32> -> vector<8x8xf32>
    %cst_17 = arith.constant 0.353553385 : f32
    %16 = vector.broadcast %cst_17 : f32 to vector<8x8xf32>
    %17 = arith.mulf %15, %16 : vector<8x8xf32>
    %cst_18 = arith.constant dense<0xFF800000> : vector<8xf32>
    %18 = vector.multi_reduction <maximumf>, %17, %cst_18 [1] : vector<8x8xf32> to vector<8xf32>
    %19 = vector.shape_cast %18 : vector<8xf32> to vector<8x1xf32>
    %20 = vector.broadcast %19 : vector<8x1xf32> to vector<8x8xf32>
    %21 = arith.subf %17, %20 : vector<8x8xf32>
    %22 = math.exp %21 : vector<8x8xf32>
    %cst_19 = arith.constant dense<0.000000e+00> : vector<8xf32>
    %23 = vector.multi_reduction <add>, %22, %cst_19 [1] : vector<8x8xf32> to vector<8xf32>
    %24 = vector.shape_cast %23 : vector<8xf32> to vector<8x1xf32>
    %25 = tpu.reciprocal %24 {approx = true} : vector<8x1xf32> -> vector<8x1xf32>
    %26 = vector.broadcast %25 : vector<8x1xf32> to vector<8x8xf32>
    %27 = arith.mulf %22, %26 : vector<8x8xf32>
    %c0_20 = arith.constant 0 : index
    %c0_21 = arith.constant 0 : index
    %c0_22 = arith.constant 0 : index
    %c0_23 = arith.constant 0 : index
    %28 = vector.load %arg9[%c0_20, %c0_21, %c0_22, %c0_23] : memref<1x4x8x8xf32, #tpu.memory_space<vmem>>, vector<1x1x8x8xf32>
    %29 = vector.shape_cast %28 : vector<1x1x8x8xf32> to vector<8x8xf32>
    %30 = vector.shape_cast %27 : vector<8x8xf32> to vector<1x1x8x8xf32>
    tpu.vector_store %arg9[%c0_20, %c0_21, %c0_22, %c0_23], %30 {strides = array<i32>} : memref<1x4x8x8xf32, #tpu.memory_space<vmem>>, vector<1x1x8x8xf32>,
    %cst_24 = arith.constant dense<0.000000e+00> : vector<8x8xf32>
    %31 = tpu.matmul %27, %14, %cst_24 {dimension_numbers = #tpu.dot_dimension_numbers<[1], [0], [0], [1], [0, 0, 1, 1], [], []>} : vector<8x8xf32>, vector<8x8xf32>, vector<8x8xf32> -> vector<8x8xf32>
    %32 = vector.extract_strided_slice %7 {offsets = [0, 8], sizes = [8, 8], strides = [1, 1]} : vector<8x32xf32> to vector<8x8xf32>
    %33 = vector.extract_strided_slice %9 {offsets = [0, 8], sizes = [8, 8], strides = [1, 1]} : vector<8x32xf32> to vector<8x8xf32>
    %34 = vector.extract_strided_slice %11 {offsets = [0, 8], sizes = [8, 8], strides = [1, 1]} : vector<8x32xf32> to vector<8x8xf32>
    %cst_25 = arith.constant dense<0.000000e+00> : vector<8x8xf32>
    %35 = tpu.matmul %32, %33, %cst_25 {dimension_numbers = #tpu.dot_dimension_numbers<[1], [1], [0], [0], [0, 0, 1, 0], [], []>} : vector<8x8xf32>, vector<8x8xf32>, vector<8x8xf32> -> vector<8x8xf32>
    %cst_26 = arith.constant 0.353553385 : f32
    %36 = vector.broadcast %cst_26 : f32 to vector<8x8xf32>
    %37 = arith.mulf %35, %36 : vector<8x8xf32>
    %cst_27 = arith.constant dense<0xFF800000> : vector<8xf32>
    %38 = vector.multi_reduction <maximumf>, %37, %cst_27 [1] : vector<8x8xf32> to vector<8xf32>
    %39 = vector.shape_cast %38 : vector<8xf32> to vector<8x1xf32>
    %40 = vector.broadcast %39 : vector<8x1xf32> to vector<8x8xf32>
    %41 = arith.subf %37, %40 : vector<8x8xf32>
    %42 = math.exp %41 : vector<8x8xf32>
    %cst_28 = arith.constant dense<0.000000e+00> : vector<8xf32>
    %43 = vector.multi_reduction <add>, %42, %cst_28 [1] : vector<8x8xf32> to vector<8xf32>
    %44 = vector.shape_cast %43 : vector<8xf32> to vector<8x1xf32>
    %45 = tpu.reciprocal %44 {approx = true} : vector<8x1xf32> -> vector<8x1xf32>
    %46 = vector.broadcast %45 : vector<8x1xf32> to vector<8x8xf32>
    %47 = arith.mulf %42, %46 : vector<8x8xf32>
    %c0_29 = arith.constant 0 : index
    %c1 = arith.constant 1 : index
    %c0_30 = arith.constant 0 : index
    %c0_31 = arith.constant 0 : index
    %48 = vector.load %arg9[%c0_29, %c1, %c0_30, %c0_31] : memref<1x4x8x8xf32, #tpu.memory_space<vmem>>, vector<1x1x8x8xf32>
    %49 = vector.shape_cast %48 : vector<1x1x8x8xf32> to vector<8x8xf32>
    %50 = vector.shape_cast %47 : vector<8x8xf32> to vector<1x1x8x8xf32>
    tpu.vector_store %arg9[%c0_29, %c1, %c0_30, %c0_31], %50 {strides = array<i32>} : memref<1x4x8x8xf32, #tpu.memory_space<vmem>>, vector<1x1x8x8xf32>,
    %cst_32 = arith.constant dense<0.000000e+00> : vector<8x8xf32>
    %51 = tpu.matmul %47, %34, %cst_32 {dimension_numbers = #tpu.dot_dimension_numbers<[1], [0], [0], [1], [0, 0, 1, 1], [], []>} : vector<8x8xf32>, vector<8x8xf32>, vector<8x8xf32> -> vector<8x8xf32>
    %52 = vector.extract_strided_slice %7 {offsets = [0, 16], sizes = [8, 8], strides = [1, 1]} : vector<8x32xf32> to vector<8x8xf32>
    %53 = vector.extract_strided_slice %9 {offsets = [0, 16], sizes = [8, 8], strides = [1, 1]} : vector<8x32xf32> to vector<8x8xf32>
    %54 = vector.extract_strided_slice %11 {offsets = [0, 16], sizes = [8, 8], strides = [1, 1]} : vector<8x32xf32> to vector<8x8xf32>
    %cst_33 = arith.constant dense<0.000000e+00> : vector<8x8xf32>
    %55 = tpu.matmul %52, %53, %cst_33 {dimension_numbers = #tpu.dot_dimension_numbers<[1], [1], [0], [0], [0, 0, 1, 0], [], []>} : vector<8x8xf32>, vector<8x8xf32>, vector<8x8xf32> -> vector<8x8xf32>
    %cst_34 = arith.constant 0.353553385 : f32
    %56 = vector.broadcast %cst_34 : f32 to vector<8x8xf32>
    %57 = arith.mulf %55, %56 : vector<8x8xf32>
    %cst_35 = arith.constant dense<0xFF800000> : vector<8xf32>
    %58 = vector.multi_reduction <maximumf>, %57, %cst_35 [1] : vector<8x8xf32> to vector<8xf32>
    %59 = vector.shape_cast %58 : vector<8xf32> to vector<8x1xf32>
    %60 = vector.broadcast %59 : vector<8x1xf32> to vector<8x8xf32>
    %61 = arith.subf %57, %60 : vector<8x8xf32>
    %62 = math.exp %61 : vector<8x8xf32>
    %cst_36 = arith.constant dense<0.000000e+00> : vector<8xf32>
    %63 = vector.multi_reduction <add>, %62, %cst_36 [1] : vector<8x8xf32> to vector<8xf32>
    %64 = vector.shape_cast %63 : vector<8xf32> to vector<8x1xf32>
    %65 = tpu.reciprocal %64 {approx = true} : vector<8x1xf32> -> vector<8x1xf32>
    %66 = vector.broadcast %65 : vector<8x1xf32> to vector<8x8xf32>
    %67 = arith.mulf %62, %66 : vector<8x8xf32>
    %c0_37 = arith.constant 0 : index
    %c2 = arith.constant 2 : index
    %c0_38 = arith.constant 0 : index
    %c0_39 = arith.constant 0 : index
    %68 = vector.load %arg9[%c0_37, %c2, %c0_38, %c0_39] : memref<1x4x8x8xf32, #tpu.memory_space<vmem>>, vector<1x1x8x8xf32>
    %69 = vector.shape_cast %68 : vector<1x1x8x8xf32> to vector<8x8xf32>
    %70 = vector.shape_cast %67 : vector<8x8xf32> to vector<1x1x8x8xf32>
    tpu.vector_store %arg9[%c0_37, %c2, %c0_38, %c0_39], %70 {strides = array<i32>} : memref<1x4x8x8xf32, #tpu.memory_space<vmem>>, vector<1x1x8x8xf32>,
    %cst_40 = arith.constant dense<0.000000e+00> : vector<8x8xf32>
    %71 = tpu.matmul %67, %54, %cst_40 {dimension_numbers = #tpu.dot_dimension_numbers<[1], [0], [0], [1], [0, 0, 1, 1], [], []>} : vector<8x8xf32>, vector<8x8xf32>, vector<8x8xf32> -> vector<8x8xf32>
    %72 = vector.extract_strided_slice %7 {offsets = [0, 24], sizes = [8, 8], strides = [1, 1]} : vector<8x32xf32> to vector<8x8xf32>
    %73 = vector.extract_strided_slice %9 {offsets = [0, 24], sizes = [8, 8], strides = [1, 1]} : vector<8x32xf32> to vector<8x8xf32>
    %74 = vector.extract_strided_slice %11 {offsets = [0, 24], sizes = [8, 8], strides = [1, 1]} : vector<8x32xf32> to vector<8x8xf32>
    %cst_41 = arith.constant dense<0.000000e+00> : vector<8x8xf32>
    %75 = tpu.matmul %72, %73, %cst_41 {dimension_numbers = #tpu.dot_dimension_numbers<[1], [1], [0], [0], [0, 0, 1, 0], [], []>} : vector<8x8xf32>, vector<8x8xf32>, vector<8x8xf32> -> vector<8x8xf32>
    %cst_42 = arith.constant 0.353553385 : f32
    %76 = vector.broadcast %cst_42 : f32 to vector<8x8xf32>
    %77 = arith.mulf %75, %76 : vector<8x8xf32>
    %cst_43 = arith.constant dense<0xFF800000> : vector<8xf32>
    %78 = vector.multi_reduction <maximumf>, %77, %cst_43 [1] : vector<8x8xf32> to vector<8xf32>
    %79 = vector.shape_cast %78 : vector<8xf32> to vector<8x1xf32>
    %80 = vector.broadcast %79 : vector<8x1xf32> to vector<8x8xf32>
    %81 = arith.subf %77, %80 : vector<8x8xf32>
    %82 = math.exp %81 : vector<8x8xf32>
    %cst_44 = arith.constant dense<0.000000e+00> : vector<8xf32>
    %83 = vector.multi_reduction <add>, %82, %cst_44 [1] : vector<8x8xf32> to vector<8xf32>
    %84 = vector.shape_cast %83 : vector<8xf32> to vector<8x1xf32>
    %85 = tpu.reciprocal %84 {approx = true} : vector<8x1xf32> -> vector<8x1xf32>
    %86 = vector.broadcast %85 : vector<8x1xf32> to vector<8x8xf32>
    %87 = arith.mulf %82, %86 : vector<8x8xf32>
    %c0_45 = arith.constant 0 : index
    %c3 = arith.constant 3 : index
    %c0_46 = arith.constant 0 : index
    %c0_47 = arith.constant 0 : index
    %88 = vector.load %arg9[%c0_45, %c3, %c0_46, %c0_47] : memref<1x4x8x8xf32, #tpu.memory_space<vmem>>, vector<1x1x8x8xf32>
    %89 = vector.shape_cast %88 : vector<1x1x8x8xf32> to vector<8x8xf32>
    %90 = vector.shape_cast %87 : vector<8x8xf32> to vector<1x1x8x8xf32>
    tpu.vector_store %arg9[%c0_45, %c3, %c0_46, %c0_47], %90 {strides = array<i32>} : memref<1x4x8x8xf32, #tpu.memory_space<vmem>>, vector<1x1x8x8xf32>,
    %cst_48 = arith.constant dense<0.000000e+00> : vector<8x8xf32>
    %91 = tpu.matmul %87, %74, %cst_48 {dimension_numbers = #tpu.dot_dimension_numbers<[1], [0], [0], [1], [0, 0, 1, 1], [], []>} : vector<8x8xf32>, vector<8x8xf32>, vector<8x8xf32> -> vector<8x8xf32>
    %92 = tpu.concatenate %31, %51, %71, %91 in 1 : vector<8x8xf32>, vector<8x8xf32>, vector<8x8xf32>, vector<8x8xf32> -> vector<8x32xf32>
    %c0_49 = arith.constant 0 : index
    %c0_50 = arith.constant 0 : index
    %93 = vector.load %arg7[%c0_49, %c0_50] : memref<32x32xf32, #tpu.memory_space<vmem>>, vector<32x32xf32>
    %cst_51 = arith.constant dense<0.000000e+00> : vector<8x32xf32>
    %94 = tpu.matmul %92, %93, %cst_51 {dimension_numbers = #tpu.dot_dimension_numbers<[1], [1], [0], [0], [0, 0, 1, 0], [], []>} : vector<8x32xf32>, vector<32x32xf32>, vector<8x32xf32> -> vector<8x32xf32>
    %95 = arith.addf %94, %1 : vector<8x32xf32>
    %cst_52 = arith.constant dense<0.000000e+00> : vector<8xf32>
    %96 = vector.multi_reduction <add>, %95, %cst_52 [1] : vector<8x32xf32> to vector<8xf32>
    %97 = vector.shape_cast %96 : vector<8xf32> to vector<8x1xf32>
    %cst_53 = arith.constant 3.200000e+01 : f32
    %98 = vector.broadcast %cst_53 : f32 to vector<8x1xf32>
    %99 = arith.divf %97, %98 : vector<8x1xf32>
    %100 = vector.broadcast %99 : vector<8x1xf32> to vector<8x32xf32>
    %101 = arith.subf %95, %100 : vector<8x32xf32>
    %102 = arith.mulf %101, %101 : vector<8x32xf32>
    %cst_54 = arith.constant dense<0.000000e+00> : vector<8xf32>
    %103 = vector.multi_reduction <add>, %102, %cst_54 [1] : vector<8x32xf32> to vector<8xf32>
    %104 = vector.shape_cast %103 : vector<8xf32> to vector<8x1xf32>
    %cst_55 = arith.constant 3.200000e+01 : f32
    %105 = vector.broadcast %cst_55 : f32 to vector<8x1xf32>
    %106 = arith.divf %104, %105 : vector<8x1xf32>
    %107 = vector.broadcast %99 : vector<8x1xf32> to vector<8x32xf32>
    %108 = arith.subf %95, %107 : vector<8x32xf32>
    %cst_56 = arith.constant 9.99999974E-6 : f32
    %109 = vector.broadcast %cst_56 : f32 to vector<8x1xf32>
    %110 = arith.addf %106, %109 : vector<8x1xf32>
    %111 = math.rsqrt %110 : vector<8x1xf32>
    %112 = vector.broadcast %111 : vector<8x1xf32> to vector<8x32xf32>
    %113 = arith.mulf %108, %112 : vector<8x32xf32>
    %c0_57 = arith.constant 0 : index
    %c0_58 = arith.constant 0 : index
    %c0_59 = arith.constant 0 : index
    %114 = vector.load %arg8[%c0_57, %c0_58, %c0_59] : memref<1x8x32xf32, #tpu.memory_space<vmem>>, vector<1x8x32xf32>
    %115 = vector.shape_cast %114 : vector<1x8x32xf32> to vector<8x32xf32>
    %116 = vector.shape_cast %113 : vector<8x32xf32> to vector<1x8x32xf32>
    tpu.vector_store %arg8[%c0_57, %c0_58, %c0_59], %116 {strides = array<i32>} : memref<1x8x32xf32, #tpu.memory_space<vmem>>, vector<1x8x32xf32>,
    return
  }
  func.func @transform_0(%arg0: i32) -> (i32, i32, i32) {
    %c0_i32 = arith.constant 0 : i32
    %c0_i32_0 = arith.constant 0 : i32
    %c0_i32_1 = arith.constant 0 : i32
    return %arg0, %c0_i32, %c0_i32_0 : i32, i32, i32
  }
  func.func @transform_1(%arg0: i32) -> (i32, i32, i32) {
    %c0_i32 = arith.constant 0 : i32
    %c0_i32_0 = arith.constant 0 : i32
    %c0_i32_1 = arith.constant 0 : i32
    return %arg0, %c0_i32, %c0_i32_0 : i32, i32, i32
  }
  func.func @transform_2(%arg0: i32) -> (i32, i32, i32) {
    %c0_i32 = arith.constant 0 : i32
    %c0_i32_0 = arith.constant 0 : i32
    %c0_i32_1 = arith.constant 0 : i32
    return %arg0, %c0_i32, %c0_i32_0 : i32, i32, i32
  }
  func.func @transform_3(%arg0: i32) -> (i32, i32) {
    %c0_i32 = arith.constant 0 : i32
    %c0_i32_0 = arith.constant 0 : i32
    %c0_i32_1 = arith.constant 0 : i32
    return %c0_i32, %c0_i32_0 : i32, i32
  }
  func.func @transform_4(%arg0: i32) -> (i32, i32) {
    %c0_i32 = arith.constant 0 : i32
    %c0_i32_0 = arith.constant 0 : i32
    %c0_i32_1 = arith.constant 0 : i32
    return %c0_i32, %c0_i32_0 : i32, i32
  }
  func.func @transform_5(%arg0: i32) -> (i32, i32) {
    %c0_i32 = arith.constant 0 : i32
    %c0_i32_0 = arith.constant 0 : i32
    %c0_i32_1 = arith.constant 0 : i32
    return %c0_i32, %c0_i32_0 : i32, i32
  }
  func.func @transform_6(%arg0: i32) -> (i32, i32) {
    %c0_i32 = arith.constant 0 : i32
    %c0_i32_0 = arith.constant 0 : i32
    %c0_i32_1 = arith.constant 0 : i32
    return %c0_i32, %c0_i32_0 : i32, i32
  }
  func.func @transform_7(%arg0: i32) -> (i32, i32, i32) {
    %c0_i32 = arith.constant 0 : i32
    %c0_i32_0 = arith.constant 0 : i32
    %c0_i32_1 = arith.constant 0 : i32
    return %arg0, %c0_i32, %c0_i32_0 : i32, i32, i32
  }
  func.func @transform_8(%arg0: i32) -> (i32, i32, i32, i32) {
    %c0_i32 = arith.constant 0 : i32
    %c0_i32_0 = arith.constant 0 : i32
    %c0_i32_1 = arith.constant 0 : i32
    %c0_i32_2 = arith.constant 0 : i32
    return %arg0, %c0_i32, %c0_i32_0, %c0_i32_1 : i32, i32, i32, i32
  }
}

</mosaic_0001>

<llo_original>
// kernel: tpu_custom_call.1
$region0: #{tpu_custom_call.1}
  #allocation0 [shape = 'u32[]', space=smem, size = 0x4, offset = 0x4, fixed_abs, tag = 'smem constant byte address 0x4 - core index']
  #allocation1 [shape = 'u32[144,128]{1,0:T(1,128)}', space=vmem, size = 0x12000, scoped, tag = 'internal scratch']
  %s0 = inlined_call_operand.hbm [shape: f32[2,8,32], index: 0, kind: input, shape index: {}]
  %s1 = inlined_call_operand.hbm [shape: f32[2,8,32], index: 1, kind: input, shape index: {}]
  %s2 = inlined_call_operand.hbm [shape: f32[2,8,32], index: 2, kind: input, shape index: {}]
  %s3 = inlined_call_operand.hbm [shape: f32[32,32], index: 3, kind: input, shape index: {}]
  %s4 = inlined_call_operand.hbm [shape: f32[32,32], index: 4, kind: input, shape index: {}]
  %s5 = inlined_call_operand.hbm [shape: f32[32,32], index: 5, kind: input, shape index: {}]
  %s6 = inlined_call_operand.hbm [shape: f32[32,32], index: 6, kind: input, shape index: {}]
  %s7 = inlined_call_operand.hbm [shape: f32[2,8,32], index: 7, kind: output, shape index: {0}]
  %s8 = inlined_call_operand.hbm [shape: f32[2,4,8,8], index: 8, kind: output, shape index: {1}]
  %9 = xla_tuple %s7, %s8
  %s10 = sld [smem:[#allocation0]]
  $region97: #{tpu_custom_call.1} parent=0
    _
  %s12 = ssub.s32 1, %s10
  %s13 = scalar_select 0, %s12, %s10
  $region1: #{tpu_custom_call.1} parent=0
    #allocation2 [shape = 'u8[8192]{0}', space=vmem, size = 0x2000, scoped, tag = 'input window, operand 0']
    #allocation3 [shape = 's32[2]{0}', space=sflag, size = 0x8, scoped, tag = 'scoped memory for tpu_custom_call.1']
    #allocation4 [shape = 's32[2]{0}', space=sflag, size = 0x8, scoped, tag = 'scoped memory for tpu_custom_call.1']
    #allocation5 [shape = 'u8[8192]{0}', space=vmem, size = 0x2000, scoped, tag = 'input window, operand 1']
    #allocation6 [shape = 's32[2]{0}', space=sflag, size = 0x8, scoped, tag = 'scoped memory for tpu_custom_call.1']
    #allocation7 [shape = 'u8[8192]{0}', space=vmem, size = 0x2000, scoped, tag = 'input window, operand 2']
    #allocation8 [shape = 'u8[16384]{0}', space=vmem, size = 0x4000, scoped, tag = 'input window, operand 3, single buffered']
    #allocation9 [shape = 's32[1]{0}', space=sflag, size = 0x4, scoped, tag = 'scoped memory for tpu_custom_call.1']
    #allocation10 [shape = 'u8[16384]{0}', space=vmem, size = 0x4000, scoped, tag = 'input window, operand 4, single buffered']
    #allocation11 [shape = 'u8[16384]{0}', space=vmem, size = 0x4000, scoped, tag = 'input window, operand 5, single buffered']
    #allocation12 [shape = 's32[1]{0}', space=sflag, size = 0x4, scoped, tag = 'scoped memory for tpu_custom_call.1']
    #allocation13 [shape = 'u8[16384]{0}', space=vmem, size = 0x4000, scoped, tag = 'input window, operand 6, single buffered']
    #allocation14 [shape = 'u8[8192]{0}', space=vmem, size = 0x2000, scoped, tag = 'output window, operand 0']
    #allocation15 [shape = 'u8[32768]{0}', space=vmem, size = 0x8000, scoped, tag = 'output window, operand 1']
    #allocation16 [shape = 's32[2]{0}', space=sflag, size = 0x8, scoped, tag = 'scoped memory for tpu_custom_call.1']
    %14 = vsyncpa [#allocation3], 0
    %s15 = scalar_lea.sflag [#allocation3], 1
    %16 = vsyncpa %s15, 0
    %17 = vsyncpa [#allocation6], 0
    %s18 = scalar_lea.sflag [#allocation6], 1
    %19 = vsyncpa %s18, 0
    %20 = vsyncpa [#allocation9], 0
    %21 = vsyncpa [#allocation12], 0
    %22 = vsyncpa [#allocation4], 0
    %s23 = scalar_lea.sflag [#allocation4], 1
    %24 = vsyncpa %s23, 0
    %25 = vsyncpa [#allocation16], 0
    %s26 = scalar_lea.sflag [#allocation16], 1
    %27 = vsyncpa %s26, 0
    loop: start=0, step=1, limit=4
    $region2: #{tpu_custom_call.1} parent=1 // loop_pre_header
      _
    $region3: #{tpu_custom_call.1} parent=1 // loop_header
      %s29 = sphi 0, %s33
      %p30 = scmp.ge.s32.totalorder %s29, 4
      %s39 = sphi 0, %s41
      %s42 = sphi 0, %s39
      %s43 = sphi 0, %s42
      %s59 = sphi 0, %s43
      %s65 = sphi 0, %s67
      %s68 = sphi 0, %s65
      %s69 = sphi 0, %s68
      %s85 = sphi 0, %s69
      %s91 = sphi 0, %s93
      %s94 = sphi 0, %s91
      %s95 = sphi 0, %s94
      %s111 = sphi 0, %s95
      %s115 = sphi 0, %s115
      %s117 = sphi 0, %s115
      %s118 = sphi 0, %s117
      %s132 = sphi 0, %s118
      %s136 = sphi 0, %s136
      %s138 = sphi 0, %s136
      %s139 = sphi 0, %s138
      %s153 = sphi 0, %s139
      %s157 = sphi 0, %s157
      %s159 = sphi 0, %s157
      %s160 = sphi 0, %s159
      %s174 = sphi 0, %s160
      %s178 = sphi 0, %s178
      %s180 = sphi 0, %s178
      %s181 = sphi 0, %s180
      %s195 = sphi 0, %s181
      %s201 = sphi 0, %s203
      %s204 = sphi 0, %s201
      %s205 = sphi 0, %s204
      %s221 = sphi 0, %s205
      %s227 = sphi 0, %s229
      %s230 = sphi 0, %s227
      %s231 = sphi 0, %s230
      %s247 = sphi 0, %s231
    $region4: #{tpu_custom_call.1} parent=1 // loop_header_branch
      %32 = sbr.rel (%p30) target = $region8
    $region5: #{tpu_custom_call.1} parent=1 // loop_body
      %s34 = ssub.s32 %s29, 1
      %s35 = ssub.s32 %s29, 2
      %s36 = sadd.s32 %s29, 1
      %s37 = ssub.s32 %s29, %s36
      %p38 = scmp.eq.s32.totalorder %s37, 0
      %s40 = sadd.s32 %s39, 1
      %s41 = scalar_select %p38, %s39, %s40
      %p44 = pneg %p38
      %p45 = scmp.eq.s32.totalorder %s29, 1
      %p46 = por %p44, %p45
      %p47 = scmp.ne.s32.totalorder %s39, %s42
      %p48 = scmp.eq.s32.totalorder %s29, 0
      %p49 = por %p47, %p48
      %p50 = scmp.ne.s32.totalorder %s39, %s42
      %p51 = scmp.eq.s32.totalorder %s34, 1
      %p52 = por %p50, %p51
      %p53 = scmp.ne.s32.totalorder %s42, %s43
      %p54 = scmp.eq.s32.totalorder %s34, 0
      %p55 = por %p53, %p54
      %p56 = scmp.ne.s32.totalorder %s42, %s43
      %p57 = scmp.eq.s32.totalorder %s35, 1
      %p58 = por %p56, %p57
      %p60 = scmp.ne.s32.totalorder %s43, %s59
      %p61 = scmp.eq.s32.totalorder %s35, 0
      %p62 = por %p60, %p61
      %s63 = ssub.s32 %s29, %s36
      %p64 = scmp.eq.s32.totalorder %s63, 0
      %s66 = sadd.s32 %s65, 1
      %s67 = scalar_select %p64, %s65, %s66
      %p70 = pneg %p64
      %p71 = scmp.eq.s32.totalorder %s29, 1
      %p72 = por %p70, %p71
      %p73 = scmp.ne.s32.totalorder %s65, %s68
      %p74 = scmp.eq.s32.totalorder %s29, 0
      %p75 = por %p73, %p74
      %p76 = scmp.ne.s32.totalorder %s65, %s68
      %p77 = scmp.eq.s32.totalorder %s34, 1
      %p78 = por %p76, %p77
      %p79 = scmp.ne.s32.totalorder %s68, %s69
      %p80 = scmp.eq.s32.totalorder %s34, 0
      %p81 = por %p79, %p80
      %p82 = scmp.ne.s32.totalorder %s68, %s69
      %p83 = scmp.eq.s32.totalorder %s35, 1
      %p84 = por %p82, %p83
      %p86 = scmp.ne.s32.totalorder %s69, %s85
      %p87 = scmp.eq.s32.totalorder %s35, 0
      %p88 = por %p86, %p87
      %s89 = ssub.s32 %s29, %s36
      %p90 = scmp.eq.s32.totalorder %s89, 0
      %s92 = sadd.s32 %s91, 1
      %s93 = scalar_select %p90, %s91, %s92
      %p96 = pneg %p90
      %p97 = scmp.eq.s32.totalorder %s29, 1
      %p98 = por %p96, %p97
      %p99 = scmp.ne.s32.totalorder %s91, %s94
      %p100 = scmp.eq.s32.totalorder %s29, 0
      %p101 = por %p99, %p100
      %p102 = scmp.ne.s32.totalorder %s91, %s94
      %p103 = scmp.eq.s32.totalorder %s34, 1
      %p104 = por %p102, %p103
      %p105 = scmp.ne.s32.totalorder %s94, %s95
      %p106 = scmp.eq.s32.totalorder %s34, 0
      %p107 = por %p105, %p106
      %p108 = scmp.ne.s32.totalorder %s94, %s95
      %p109 = scmp.eq.s32.totalorder %s35, 1
      %p110 = por %p108, %p109
      %p112 = scmp.ne.s32.totalorder %s95, %s111
      %p113 = scmp.eq.s32.totalorder %s35, 0
      %p114 = por %p112, %p113
      %s116 = sadd.s32 %s115, 1
      %p119 = scmp.eq.s32.totalorder %s29, 1
      %p120 = scmp.ne.s32.totalorder %s115, %s117
      %p121 = scmp.eq.s32.totalorder %s29, 0
      %p122 = por %p120, %p121
      %p123 = scmp.ne.s32.totalorder %s115, %s117
      %p124 = scmp.eq.s32.totalorder %s34, 1
      %p125 = por %p123, %p124
      %p126 = scmp.ne.s32.totalorder %s117, %s118
      %p127 = scmp.eq.s32.totalorder %s34, 0
      %p128 = por %p126, %p127
      %p129 = scmp.ne.s32.totalorder %s117, %s118
      %p130 = scmp.eq.s32.totalorder %s35, 1
      %p131 = por %p129, %p130
      %p133 = scmp.ne.s32.totalorder %s118, %s132
      %p134 = scmp.eq.s32.totalorder %s35, 0
      %p135 = por %p133, %p134
      %s137 = sadd.s32 %s136, 1
      %p140 = scmp.eq.s32.totalorder %s29, 1
      %p141 = scmp.ne.s32.totalorder %s136, %s138
      %p142 = scmp.eq.s32.totalorder %s29, 0
      %p143 = por %p141, %p142
      %p144 = scmp.ne.s32.totalorder %s136, %s138
      %p145 = scmp.eq.s32.totalorder %s34, 1
      %p146 = por %p144, %p145
      %p147 = scmp.ne.s32.totalorder %s138, %s139
      %p148 = scmp.eq.s32.totalorder %s34, 0
      %p149 = por %p147, %p148
      %p150 = scmp.ne.s32.totalorder %s138, %s139
      %p151 = scmp.eq.s32.totalorder %s35, 1
      %p152 = por %p150, %p151
      %p154 = scmp.ne.s32.totalorder %s139, %s153
      %p155 = scmp.eq.s32.totalorder %s35, 0
      %p156 = por %p154, %p155
      %s158 = sadd.s32 %s157, 1
      %p161 = scmp.eq.s32.totalorder %s29, 1
      %p162 = scmp.ne.s32.totalorder %s157, %s159
      %p163 = scmp.eq.s32.totalorder %s29, 0
      %p164 = por %p162, %p163
      %p165 = scmp.ne.s32.totalorder %s157, %s159
      %p166 = scmp.eq.s32.totalorder %s34, 1
      %p167 = por %p165, %p166
      %p168 = scmp.ne.s32.totalorder %s159, %s160
      %p169 = scmp.eq.s32.totalorder %s34, 0
      %p170 = por %p168, %p169
      %p171 = scmp.ne.s32.totalorder %s159, %s160
      %p172 = scmp.eq.s32.totalorder %s35, 1
      %p173 = por %p171, %p172
      %p175 = scmp.ne.s32.totalorder %s160, %s174
      %p176 = scmp.eq.s32.totalorder %s35, 0
      %p177 = por %p175, %p176
      %s179 = sadd.s32 %s178, 1
      %p182 = scmp.eq.s32.totalorder %s29, 1
      %p183 = scmp.ne.s32.totalorder %s178, %s180
      %p184 = scmp.eq.s32.totalorder %s29, 0
      %p185 = por %p183, %p184
      %p186 = scmp.ne.s32.totalorder %s178, %s180
      %p187 = scmp.eq.s32.totalorder %s34, 1
      %p188 = por %p186, %p187
      %p189 = scmp.ne.s32.totalorder %s180, %s181
      %p190 = scmp.eq.s32.totalorder %s34, 0
      %p191 = por %p189, %p190
      %p192 = scmp.ne.s32.totalorder %s180, %s181
      %p193 = scmp.eq.s32.totalorder %s35, 1
      %p194 = por %p192, %p193
      %p196 = scmp.ne.s32.totalorder %s181, %s195
      %p197 = scmp.eq.s32.totalorder %s35, 0
      %p198 = por %p196, %p197
      %s199 = ssub.s32 %s29, %s36
      %p200 = scmp.eq.s32.totalorder %s199, 0
      %s202 = sadd.s32 %s201, 1
      %s203 = scalar_select %p200, %s201, %s202
      %p206 = pneg %p200
      %p207 = scmp.eq.s32.totalorder %s29, 1
      %p208 = por %p206, %p207
      %p209 = scmp.ne.s32.totalorder %s201, %s204
      %p210 = scmp.eq.s32.totalorder %s29, 0
      %p211 = por %p209, %p210
      %p212 = scmp.ne.s32.totalorder %s201, %s204
      %p213 = scmp.eq.s32.totalorder %s34, 1
      %p214 = por %p212, %p213
      %p215 = scmp.ne.s32.totalorder %s204, %s205
      %p216 = scmp.eq.s32.totalorder %s34, 0
      %p217 = por %p215, %p216
      %p218 = scmp.ne.s32.totalorder %s204, %s205
      %p219 = scmp.eq.s32.totalorder %s35, 1
      %p220 = por %p218, %p219
      %p222 = scmp.ne.s32.totalorder %s205, %s221
      %p223 = scmp.eq.s32.totalorder %s35, 0
      %p224 = por %p222, %p223
      %s225 = ssub.s32 %s29, %s36
      %p226 = scmp.eq.s32.totalorder %s225, 0
      %s228 = sadd.s32 %s227, 1
      %s229 = scalar_select %p226, %s227, %s228
      %p232 = pneg %p226
      %p233 = scmp.eq.s32.totalorder %s29, 1
      %p234 = por %p232, %p233
      %p235 = scmp.ne.s32.totalorder %s227, %s230
      %p236 = scmp.eq.s32.totalorder %s29, 0
      %p237 = por %p235, %p236
      %p238 = scmp.ne.s32.totalorder %s227, %s230
      %p239 = scmp.eq.s32.totalorder %s34, 1
      %p240 = por %p238, %p239
      %p241 = scmp.ne.s32.totalorder %s230, %s231
      %p242 = scmp.eq.s32.totalorder %s34, 0
      %p243 = por %p241, %p242
      %p244 = scmp.ne.s32.totalorder %s230, %s231
      %p245 = scmp.eq.s32.totalorder %s35, 1
      %p246 = por %p244, %p245
      %p248 = scmp.ne.s32.totalorder %s231, %s247
      %p249 = scmp.eq.s32.totalorder %s35, 0
      %p250 = por %p248, %p249
      %p251 = scmp.le.s32.totalorder 1, %s29
      %p252 = scmp.lt.s32.totalorder %s29, 3
      %p253 = pnand %p251, %p252
      %p254 = pneg %p253
      // Predicated region
      $region9: #{tpu_custom_call.1} parent=5 // pred_check
        _
      $region10: #{tpu_custom_call.1} parent=5 // pred_check_branch
        %256 = sbr.rel (%p253) target = $region12
      $region11: #{tpu_custom_call.1} parent=5 // pred_region
        %s257 = ssub.s32 %s29, 1
        // Predicated region
        $region13: #{tpu_custom_call.1} parent=11 // pred_check
          %p258 = pneg %p128
        $region14: #{tpu_custom_call.1} parent=11 // pred_check_branch
          %260 = sbr.rel (%p258) target = $region16
        $region15: #{tpu_custom_call.1} parent=11 // pred_region
          %s262 = ssub.s32 512, 512
          %263 = vsyncadd [#allocation9], %s262
          %s264 = sshll.u32 [#allocation8], 4
          %s265 = int_to_ptr.vmem [resolvable:$true] %s264
          %270 = dma.hbm_to_vmem [thread:$0]  %s3, 512, %s265, [#allocation9], 128, 128, 8
        $region16: #{tpu_custom_call.1} parent=11 // pred_fallthru
          _
        // Predicated region
        $region17: #{tpu_custom_call.1} parent=11 // pred_check
          %p271 = pneg %p149
        $region18: #{tpu_custom_call.1} parent=11 // pred_check_branch
          %273 = sbr.rel (%p271) target = $region20
        $region19: #{tpu_custom_call.1} parent=11 // pred_region
          %s275 = ssub.s32 512, 512
          %276 = vsyncadd [#allocation9], %s275
          %s277 = sshll.u32 [#allocation10], 4
          %s278 = int_to_ptr.vmem [resolvable:$true] %s277
          %283 = dma.hbm_to_vmem [thread:$0]  %s4, 512, %s278, [#allocation9], 128, 128, 8
        $region20: #{tpu_custom_call.1} parent=11 // pred_fallthru
          _
        // Predicated region
        $region21: #{tpu_custom_call.1} parent=11 // pred_check
          %p284 = pneg %p170
        $region22: #{tpu_custom_call.1} parent=11 // pred_check_branch
          %286 = sbr.rel (%p284) target = $region24
        $region23: #{tpu_custom_call.1} parent=11 // pred_region
          %s288 = ssub.s32 512, 512
          %289 = vsyncadd [#allocation12], %s288
          %s290 = sshll.u32 [#allocation11], 4
          %s291 = int_to_ptr.vmem [resolvable:$true] %s290
          %296 = dma.hbm_to_vmem [thread:$0]  %s5, 512, %s291, [#allocation12], 128, 128, 8
        $region24: #{tpu_custom_call.1} parent=11 // pred_fallthru
          _
        // Predicated region
        $region25: #{tpu_custom_call.1} parent=11 // pred_check
          %p297 = pneg %p191
        $region26: #{tpu_custom_call.1} parent=11 // pred_check_branch
          %299 = sbr.rel (%p297) target = $region28
        $region27: #{tpu_custom_call.1} parent=11 // pred_region
          %s301 = ssub.s32 512, 512
          %302 = vsyncadd [#allocation12], %s301
          %s303 = sshll.u32 [#allocation13], 4
          %s304 = int_to_ptr.vmem [resolvable:$true] %s303
          %309 = dma.hbm_to_vmem [thread:$0]  %s6, 512, %s304, [#allocation12], 128, 128, 8
        $region28: #{tpu_custom_call.1} parent=11 // pred_fallthru
          _
      $region12: #{tpu_custom_call.1} parent=5 // pred_fallthru
        _
      %p310 = scmp.lt.s32.totalorder %s29, 2
      // Predicated region
      $region29: #{tpu_custom_call.1} parent=5 // pred_check
        %p311 = pneg %p310
      $region30: #{tpu_custom_call.1} parent=5 // pred_check_branch
        %313 = sbr.rel (%p311) target = $region32
      $region31: #{tpu_custom_call.1} parent=5 // pred_region
        // Predicated region
        $region33: #{tpu_custom_call.1} parent=31 // pred_check
          %p314 = pneg %p49
        $region34: #{tpu_custom_call.1} parent=31 // pred_check_branch
          %316 = sbr.rel (%p314) target = $region36
        $region35: #{tpu_custom_call.1} parent=31 // pred_region
          %s317 = sand.u32 %s39, 1
          %s318 = scalar_lea.sflag [#allocation3], %s317
          %s319 = sand.u32 %s39, 1
          %s320 = smul.addr %s319, 8
          %s321 = scalar_lea.vmem [#allocation2], %s320
          %s323 = ssub.s32 128, 128
          %324 = vsyncadd %s318, %s323
          %s325 = smul.addr %s29, 128
          %s326 = scalar_lea.hbm %s0, %s325
          %s328 = sshll.u32 %s321, 4
          %s329 = int_to_ptr.vmem [resolvable:$true] %s328
          %331 = dma.hbm_to_vmem [thread:$0]  %s326, 128, %s329, %s318
        $region36: #{tpu_custom_call.1} parent=31 // pred_fallthru
          _
        // Predicated region
        $region37: #{tpu_custom_call.1} parent=31 // pred_check
          %p332 = pneg %p75
        $region38: #{tpu_custom_call.1} parent=31 // pred_check_branch
          %334 = sbr.rel (%p332) target = $region40
        $region39: #{tpu_custom_call.1} parent=31 // pred_region
          %s335 = sand.u32 %s29, 1
          %s336 = scalar_lea.sflag [#allocation6], %s335
          %s337 = sand.u32 %s65, 1
          %s338 = smul.addr %s337, 8
          %s339 = scalar_lea.vmem [#allocation5], %s338
          %s341 = ssub.s32 128, 128
          %342 = vsyncadd %s336, %s341
          %s343 = smul.addr %s29, 128
          %s344 = scalar_lea.hbm %s1, %s343
          %s346 = sshll.u32 %s339, 4
          %s347 = int_to_ptr.vmem [resolvable:$true] %s346
          %349 = dma.hbm_to_vmem [thread:$0]  %s344, 128, %s347, %s336
        $region40: #{tpu_custom_call.1} parent=31 // pred_fallthru
          _
        // Predicated region
        $region41: #{tpu_custom_call.1} parent=31 // pred_check
          %p350 = pneg %p101
        $region42: #{tpu_custom_call.1} parent=31 // pred_check_branch
          %352 = sbr.rel (%p350) target = $region44
        $region43: #{tpu_custom_call.1} parent=31 // pred_region
          %s353 = sand.u32 %s29, 1
          %s354 = scalar_lea.sflag [#allocation6], %s353
          %s355 = sand.u32 %s91, 1
          %s356 = smul.addr %s355, 8
          %s357 = scalar_lea.vmem [#allocation7], %s356
          %s359 = ssub.s32 128, 128
          %360 = vsyncadd %s354, %s359
          %s361 = smul.addr %s29, 128
          %s362 = scalar_lea.hbm %s2, %s361
          %s364 = sshll.u32 %s357, 4
          %s365 = int_to_ptr.vmem [resolvable:$true] %s364
          %367 = dma.hbm_to_vmem [thread:$0]  %s362, 128, %s365, %s354
        $region44: #{tpu_custom_call.1} parent=31 // pred_fallthru
          _
      $region32: #{tpu_custom_call.1} parent=5 // pred_fallthru
        _
      %p368 = scmp.le.s32.totalorder 1, %s29
      %p369 = scmp.lt.s32.totalorder %s29, 3
      %p370 = pnand %p368, %p369
      %p371 = pneg %p370
      // Predicated region
      $region45: #{tpu_custom_call.1} parent=5 // pred_check
        _
      $region46: #{tpu_custom_call.1} parent=5 // pred_check_branch
        %373 = sbr.rel (%p370) target = $region48
      $region47: #{tpu_custom_call.1} parent=5 // pred_region
        %s374 = ssub.s32 %s29, 1
        %s375 = sand.u32 %s42, 1
        %s376 = scalar_lea.sflag [#allocation3], %s375
        %s377 = sand.u32 %s42, 1
        %s378 = smul.addr %s377, 8
        %s379 = scalar_lea.vmem [#allocation2], %s378
        // Predicated region
        $region49: #{tpu_custom_call.1} parent=47 // pred_check
          %p380 = pneg %p55
        $region50: #{tpu_custom_call.1} parent=47 // pred_check_branch
          %382 = sbr.rel (%p380) target = $region52
        $region51: #{tpu_custom_call.1} parent=47 // pred_region
          %383 = dma.done %s376, 128
        $region52: #{tpu_custom_call.1} parent=47 // pred_fallthru
          _
        %s384 = sand.u32 %s34, 1
        %s385 = scalar_lea.sflag [#allocation6], %s384
        %s386 = sand.u32 %s68, 1
        %s387 = smul.addr %s386, 8
        %s388 = scalar_lea.vmem [#allocation5], %s387
        // Predicated region
        $region53: #{tpu_custom_call.1} parent=47 // pred_check
          %p389 = pneg %p81
        $region54: #{tpu_custom_call.1} parent=47 // pred_check_branch
          %391 = sbr.rel (%p389) target = $region56
        $region55: #{tpu_custom_call.1} parent=47 // pred_region
          %392 = dma.done %s385, 128
        $region56: #{tpu_custom_call.1} parent=47 // pred_fallthru
          _
        %s393 = sand.u32 %s34, 1
        %s394 = scalar_lea.sflag [#allocation6], %s393
        %s395 = sand.u32 %s94, 1
        %s396 = smul.addr %s395, 8
        %s397 = scalar_lea.vmem [#allocation7], %s396
        // Predicated region
        $region57: #{tpu_custom_call.1} parent=47 // pred_check
          %p398 = pneg %p107
        $region58: #{tpu_custom_call.1} parent=47 // pred_check_branch
          %400 = sbr.rel (%p398) target = $region60
        $region59: #{tpu_custom_call.1} parent=47 // pred_region
          %401 = dma.done %s394, 128
        $region60: #{tpu_custom_call.1} parent=47 // pred_fallthru
          _
        // Predicated region
        $region61: #{tpu_custom_call.1} parent=47 // pred_check
          %p402 = pneg %p128
        $region62: #{tpu_custom_call.1} parent=47 // pred_check_branch
          %404 = sbr.rel (%p402) target = $region64
        $region63: #{tpu_custom_call.1} parent=47 // pred_region
          %405 = dma.done [#allocation9], 512
        $region64: #{tpu_custom_call.1} parent=47 // pred_fallthru
          _
        // Predicated region
        $region65: #{tpu_custom_call.1} parent=47 // pred_check
          %p406 = pneg %p149
        $region66: #{tpu_custom_call.1} parent=47 // pred_check_branch
          %408 = sbr.rel (%p406) target = $region68
        $region67: #{tpu_custom_call.1} parent=47 // pred_region
          %409 = dma.done [#allocation9], 512
        $region68: #{tpu_custom_call.1} parent=47 // pred_fallthru
          _
        // Predicated region
        $region69: #{tpu_custom_call.1} parent=47 // pred_check
          %p410 = pneg %p170
        $region70: #{tpu_custom_call.1} parent=47 // pred_check_branch
          %412 = sbr.rel (%p410) target = $region72
        $region71: #{tpu_custom_call.1} parent=47 // pred_region
          %413 = dma.done [#allocation12], 512
        $region72: #{tpu_custom_call.1} parent=47 // pred_fallthru
          _
        // Predicated region
        $region73: #{tpu_custom_call.1} parent=47 // pred_check
          %p414 = pneg %p191
        $region74: #{tpu_custom_call.1} parent=47 // pred_check_branch
          %416 = sbr.rel (%p414) target = $region76
        $region75: #{tpu_custom_call.1} parent=47 // pred_region
          %417 = dma.done [#allocation12], 512
        $region76: #{tpu_custom_call.1} parent=47 // pred_fallthru
          _
        %s418 = sand.u32 %s42, 1
        %s419 = scalar_lea.sflag [#allocation3], %s418
        %s420 = sand.u32 %s42, 1
        %s421 = smul.addr %s420, 8
        %s422 = scalar_lea.vmem [#allocation2], %s421
        %p423 = pneg %p55
        %p424 = pneg %p52
        %s425 = sand.u32 %s34, 1
        %s426 = scalar_lea.sflag [#allocation6], %s425
        %s427 = sand.u32 %s68, 1
        %s428 = smul.addr %s427, 8
        %s429 = scalar_lea.vmem [#allocation5], %s428
        %p430 = pneg %p81
        %p431 = pneg %p78
        %s432 = sand.u32 %s34, 1
        %s433 = scalar_lea.sflag [#allocation6], %s432
        %s434 = sand.u32 %s94, 1
        %s435 = smul.addr %s434, 8
        %s436 = scalar_lea.vmem [#allocation7], %s435
        %p437 = pneg %p107
        %p438 = pneg %p104
        %p439 = pneg %p128
        %p440 = pneg %p125
        %p441 = pneg %p149
        %p442 = pneg %p146
        %p443 = pneg %p170
        %p444 = pneg %p167
        %p445 = pneg %p191
        %p446 = pneg %p188
        %p447 = pneg %p217
        %p448 = pneg %p214
        %s449 = sand.u32 %s204, 1
        %s450 = scalar_lea.sflag [#allocation4], %s449
        %s451 = sand.u32 %s204, 1
        %s452 = smul.addr %s451, 8
        %s453 = scalar_lea.vmem [#allocation14], %s452
        %p454 = pneg %p243
        %p455 = pneg %p240
        %s456 = sand.u32 %s230, 1
        %s457 = scalar_lea.sflag [#allocation16], %s456
        %s458 = sand.u32 %s230, 1
        %s459 = smul.addr %s458, 32
        %s460 = scalar_lea.vmem [#allocation15], %s459
        %v461 = vld [vmem:[%s379] sm:$0xff]
        %v462 = vld [vmem:[%s388] sm:$0xff]
        %v463 = vld [vmem:[%s397] sm:$0xff]
        %v464 = vld [vmem:[#allocation8] sm:$0xff]
        %v465 = vld [vmem:[#allocation8 + $0x8] sm:$0xff]
        %v466 = vld [vmem:[#allocation8 + $0x10] sm:$0xff]
        %v467 = vld [vmem:[#allocation8 + $0x18] sm:$0xff]
        %vm468 = vcmask 261120
        %v470 = vsel %vm468, %v461, 0
        %472 = vmatprep.subr.mxu0 0.0
        %473 = vmatpush1.msra.mxu0 %v464
        %474 = vmatprep.subr.mxu0 0.0
        %475 = vmatpush1.msra.mxu0 %v465
        %476 = vmatprep.subr.mxu0 0.0
        %477 = vmatpush1.msra.mxu0 %v466
        %478 = vmatprep.subr.mxu0 0.0
        %479 = vmatpush1.msra.mxu0 %v467
        %480 = vmatprep.subr.mxu0 0.0
        %481 = vmatpush1.msra.mxu0 0.0
        %482 = vmatprep.subr.mxu0 0.0
        %483 = vmatpush1.msra.mxu0 0.0
        %484 = vmatprep.subr.mxu0 0.0
        %485 = vmatpush1.msra.mxu0 0.0
        %486 = vmatprep.subr.mxu0 0.0
        %487 = vmatpush1.msra.mxu0 0.0
        %488 = vmatprep.subr.mxu0 0.0
        %489 = vmatpush1.msra.mxu0 0.0
        %490 = vmatprep.subr.mxu0 0.0
        %491 = vmatpush1.msra.mxu0 0.0
        %492 = vmatprep.subr.mxu0 0.0
        %493 = vmatpush1.msra.mxu0 0.0
        %494 = vmatprep.subr.mxu0 0.0
        %495 = vmatpush1.msra.mxu0 0.0
        %496 = vmatprep.subr.mxu0 0.0
        %497 = vmatpush1.msra.mxu0 0.0
        %498 = vmatprep.subr.mxu0 0.0
        %499 = vmatpush1.msra.mxu0 0.0
        %500 = vmatprep.subr.mxu0 0.0
        %501 = vmatpush1.msra.mxu0 0.0
        %502 = vmatprep.subr.mxu0 0.0
        %503 = vmatpush1.msra.mxu0 0.0
        %504 = vmatprep.subr.mxu0 0.0
        %505 = vmatpush1.msra.mxu0 0.0
        %506 = vmatprep.subr.mxu0 0.0
        %507 = vmatpush1.msra.mxu0 0.0
        %508 = vmatprep.subr.mxu0 0.0
        %509 = vmatpush1.msra.mxu0 0.0
        %510 = vmatprep.subr.mxu0 0.0
        %511 = vmatpush1.msra.mxu0 0.0
        %512 = vmatprep.subr.mxu0 0.0
        %513 = vmatpush1.msra.mxu0 0.0
        %514 = vmatprep.subr.mxu0 0.0
        %515 = vmatpush1.msra.mxu0 0.0
        %516 = vmatprep.subr.mxu0 0.0
        %517 = vmatpush1.msra.mxu0 0.0
        %518 = vmatprep.subr.mxu0 0.0
        %519 = vmatpush1.msra.mxu0 0.0
        %520 = vmatprep.subr.mxu0 0.0
        %521 = vmatpush1.msra.mxu0 0.0
        %522 = vmatprep.subr.mxu0 0.0
        %523 = vmatpush1.msra.mxu0 0.0
        %524 = vmatprep.subr.mxu0 0.0
        %525 = vmatpush1.msra.mxu0 0.0
        %526 = vmatprep.subr.mxu0 0.0
        %527 = vmatpush1.msra.mxu0 0.0
        %528 = vmatprep.subr.mxu0 0.0
        %529 = vmatpush1.msra.mxu0 0.0
        %530 = vmatprep.subr.mxu0 0.0
        %531 = vmatpush1.msra.mxu0 0.0
        %532 = vmatprep.subr.mxu0 0.0
        %533 = vmatpush1.msra.mxu0 0.0
        %534 = vmatprep.subr.mxu0 0.0
        %535 = vmatpush1.msra.mxu0 0.0
        %536 = vmatprep.mubr.f32.mxu0 0.0
        %537 = vmatmul.mubr.f32.gmra.mrb[0].mxu0 %v470
        %v538 = vpop.f32.mrb[0].mxu0
        %v539 = vadd.f32 0.0, %v538
        %v540 = vpop.f32.mrb[0].mxu0
        %541 = vdwg.mxu0
        %v542 = vld [vmem:[#allocation10] sm:$0xff]
        %v543 = vld [vmem:[#allocation10 + $0x8] sm:$0xff]
        %v544 = vld [vmem:[#allocation10 + $0x10] sm:$0xff]
        %v545 = vld [vmem:[#allocation10 + $0x18] sm:$0xff]
        %v547 = vsel %vm468, %v462, 0
        %549 = vmatprep.subr.mxu0 0.0
        %550 = vmatpush1.msra.mxu0 %v542
        %551 = vmatprep.subr.mxu0 0.0
        %552 = vmatpush1.msra.mxu0 %v543
        %553 = vmatprep.subr.mxu0 0.0
        %554 = vmatpush1.msra.mxu0 %v544
        %555 = vmatprep.subr.mxu0 0.0
        %556 = vmatpush1.msra.mxu0 %v545
        %557 = vmatprep.subr.mxu0 0.0
        %558 = vmatpush1.msra.mxu0 0.0
        %559 = vmatprep.subr.mxu0 0.0
        %560 = vmatpush1.msra.mxu0 0.0
        %561 = vmatprep.subr.mxu0 0.0
        %562 = vmatpush1.msra.mxu0 0.0
        %563 = vmatprep.subr.mxu0 0.0
        %564 = vmatpush1.msra.mxu0 0.0
        %565 = vmatprep.subr.mxu0 0.0
        %566 = vmatpush1.msra.mxu0 0.0
        %567 = vmatprep.subr.mxu0 0.0
        %568 = vmatpush1.msra.mxu0 0.0
        %569 = vmatprep.subr.mxu0 0.0
        %570 = vmatpush1.msra.mxu0 0.0
        %571 = vmatprep.subr.mxu0 0.0
        %572 = vmatpush1.msra.mxu0 0.0
        %573 = vmatprep.subr.mxu0 0.0
        %574 = vmatpush1.msra.mxu0 0.0
        %575 = vmatprep.subr.mxu0 0.0
        %576 = vmatpush1.msra.mxu0 0.0
        %577 = vmatprep.subr.mxu0 0.0
        %578 = vmatpush1.msra.mxu0 0.0
        %579 = vmatprep.subr.mxu0 0.0
        %580 = vmatpush1.msra.mxu0 0.0
        %581 = vmatprep.subr.mxu0 0.0
        %582 = vmatpush1.msra.mxu0 0.0
        %583 = vmatprep.subr.mxu0 0.0
        %584 = vmatpush1.msra.mxu0 0.0
        %585 = vmatprep.subr.mxu0 0.0
        %586 = vmatpush1.msra.mxu0 0.0
        %587 = vmatprep.subr.mxu0 0.0
        %588 = vmatpush1.msra.mxu0 0.0
        %589 = vmatprep.subr.mxu0 0.0
        %590 = vmatpush1.msra.mxu0 0.0
        %591 = vmatprep.subr.mxu0 0.0
        %592 = vmatpush1.msra.mxu0 0.0
        %593 = vmatprep.subr.mxu0 0.0
        %594 = vmatpush1.msra.mxu0 0.0
        %595 = vmatprep.subr.mxu0 0.0
        %596 = vmatpush1.msra.mxu0 0.0
        %597 = vmatprep.subr.mxu0 0.0
        %598 = vmatpush1.msra.mxu0 0.0
        %599 = vmatprep.subr.mxu0 0.0
        %600 = vmatpush1.msra.mxu0 0.0
        %601 = vmatprep.subr.mxu0 0.0
        %602 = vmatpush1.msra.mxu0 0.0
        %603 = vmatprep.subr.mxu0 0.0
        %604 = vmatpush1.msra.mxu0 0.0
        %605 = vmatprep.subr.mxu0 0.0
        %606 = vmatpush1.msra.mxu0 0.0
        %607 = vmatprep.subr.mxu0 0.0
        %608 = vmatpush1.msra.mxu0 0.0
        %609 = vmatprep.subr.mxu0 0.0
        %610 = vmatpush1.msra.mxu0 0.0
        %611 = vmatprep.subr.mxu0 0.0
        %612 = vmatpush1.msra.mxu0 0.0
        %613 = vmatprep.mubr.f32.mxu0 0.0
        %614 = vmatmul.mubr.f32.gmra.mrb[0].mxu0 %v547
        %v615 = vpop.f32.mrb[0].mxu0
        %v616 = vadd.f32 0.0, %v615
        %v617 = vpop.f32.mrb[0].mxu0
        %618 = vdwg.mxu0
        %v619 = vld [vmem:[#allocation11] sm:$0xff]
        %v620 = vld [vmem:[#allocation11 + $0x8] sm:$0xff]
        %v621 = vld [vmem:[#allocation11 + $0x10] sm:$0xff]
        %v622 = vld [vmem:[#allocation11 + $0x18] sm:$0xff]
        %v624 = vsel %vm468, %v463, 0
        %626 = vmatprep.subr.mxu0 0.0
        %627 = vmatpush1.msra.mxu0 %v619
        %628 = vmatprep.subr.mxu0 0.0
        %629 = vmatpush1.msra.mxu0 %v620
        %630 = vmatprep.subr.mxu0 0.0
        %631 = vmatpush1.msra.mxu0 %v621
        %632 = vmatprep.subr.mxu0 0.0
        %633 = vmatpush1.msra.mxu0 %v622
        %634 = vmatprep.subr.mxu0 0.0
        %635 = vmatpush1.msra.mxu0 0.0
        %636 = vmatprep.subr.mxu0 0.0
        %637 = vmatpush1.msra.mxu0 0.0
        %638 = vmatprep.subr.mxu0 0.0
        %639 = vmatpush1.msra.mxu0 0.0
        %640 = vmatprep.subr.mxu0 0.0
        %641 = vmatpush1.msra.mxu0 0.0
        %642 = vmatprep.subr.mxu0 0.0
        %643 = vmatpush1.msra.mxu0 0.0
        %644 = vmatprep.subr.mxu0 0.0
        %645 = vmatpush1.msra.mxu0 0.0
        %646 = vmatprep.subr.mxu0 0.0
        %647 = vmatpush1.msra.mxu0 0.0
        %648 = vmatprep.subr.mxu0 0.0
        %649 = vmatpush1.msra.mxu0 0.0
        %650 = vmatprep.subr.mxu0 0.0
        %651 = vmatpush1.msra.mxu0 0.0
        %652 = vmatprep.subr.mxu0 0.0
        %653 = vmatpush1.msra.mxu0 0.0
        %654 = vmatprep.subr.mxu0 0.0
        %655 = vmatpush1.msra.mxu0 0.0
        %656 = vmatprep.subr.mxu0 0.0
        %657 = vmatpush1.msra.mxu0 0.0
        %658 = vmatprep.subr.mxu0 0.0
        %659 = vmatpush1.msra.mxu0 0.0
        %660 = vmatprep.subr.mxu0 0.0
        %661 = vmatpush1.msra.mxu0 0.0
        %662 = vmatprep.subr.mxu0 0.0
        %663 = vmatpush1.msra.mxu0 0.0
        %664 = vmatprep.subr.mxu0 0.0
        %665 = vmatpush1.msra.mxu0 0.0
        %666 = vmatprep.subr.mxu0 0.0
        %667 = vmatpush1.msra.mxu0 0.0
        %668 = vmatprep.subr.mxu0 0.0
        %669 = vmatpush1.msra.mxu0 0.0
        %670 = vmatprep.subr.mxu0 0.0
        %671 = vmatpush1.msra.mxu0 0.0
        %672 = vmatprep.subr.mxu0 0.0
        %673 = vmatpush1.msra.mxu0 0.0
        %674 = vmatprep.subr.mxu0 0.0
        %675 = vmatpush1.msra.mxu0 0.0
        %676 = vmatprep.subr.mxu0 0.0
        %677 = vmatpush1.msra.mxu0 0.0
        %678 = vmatprep.subr.mxu0 0.0
        %679 = vmatpush1.msra.mxu0 0.0
        %680 = vmatprep.subr.mxu0 0.0
        %681 = vmatpush1.msra.mxu0 0.0
        %682 = vmatprep.subr.mxu0 0.0
        %683 = vmatpush1.msra.mxu0 0.0
        %684 = vmatprep.subr.mxu0 0.0
        %685 = vmatpush1.msra.mxu0 0.0
        %686 = vmatprep.subr.mxu0 0.0
        %687 = vmatpush1.msra.mxu0 0.0
        %688 = vmatprep.subr.mxu0 0.0
        %689 = vmatpush1.msra.mxu0 0.0
        %690 = vmatprep.mubr.f32.mxu0 0.0
        %691 = vmatmul.mubr.f32.gmra.mrb[0].mxu0 %v624
        %v692 = vpop.f32.mrb[0].mxu0
        %v693 = vadd.f32 0.0, %v692
        %v694 = vpop.f32.mrb[0].mxu0
        %695 = vdwg.mxu0
        %vm696 = vcmask 64512
        %v698 = vsel %vm696, %v539, 0
        %v701 = vsel %vm696, %v616, 0
        %703 = vmatprep.subr.mxu0 0.0
        %704 = vmatpush1.xpose.msra.mxu0 %v701
        %705 = vmatprep.subr.mxu0 0.0
        %706 = vmatpush1.xpose.msra.mxu0 0.0
        %707 = vmatprep.subr.mxu0 0.0
        %708 = vmatpush1.xpose.msra.mxu0 0.0
        %709 = vmatprep.subr.mxu0 0.0
        %710 = vmatpush1.xpose.msra.mxu0 0.0
        %711 = vmatprep.subr.mxu0 0.0
        %712 = vmatpush1.xpose.msra.mxu0 0.0
        %713 = vmatprep.subr.mxu0 0.0
        %714 = vmatpush1.xpose.msra.mxu0 0.0
        %715 = vmatprep.subr.mxu0 0.0
        %716 = vmatpush1.xpose.msra.mxu0 0.0
        %717 = vmatprep.subr.mxu0 0.0
        %718 = vmatpush1.xpose.msra.mxu0 0.0
        %719 = vmatprep.subr.mxu0 0.0
        %720 = vmatpush1.xpose.msra.mxu0 0.0
        %721 = vmatprep.subr.mxu0 0.0
        %722 = vmatpush1.xpose.msra.mxu0 0.0
        %723 = vmatprep.subr.mxu0 0.0
        %724 = vmatpush1.xpose.msra.mxu0 0.0
        %725 = vmatprep.subr.mxu0 0.0
        %726 = vmatpush1.xpose.msra.mxu0 0.0
        %727 = vmatprep.subr.mxu0 0.0
        %728 = vmatpush1.xpose.msra.mxu0 0.0
        %729 = vmatprep.subr.mxu0 0.0
        %730 = vmatpush1.xpose.msra.mxu0 0.0
        %731 = vmatprep.subr.mxu0 0.0
        %732 = vmatpush1.xpose.msra.mxu0 0.0
        %733 = vmatprep.subr.mxu0 0.0
        %734 = vmatpush1.xpose.msra.mxu0 0.0
        %735 = vmatprep.subr.mxu0 0.0
        %736 = vmatpush1.xpose.msra.mxu0 0.0
        %737 = vmatprep.subr.mxu0 0.0
        %738 = vmatpush1.xpose.msra.mxu0 0.0
        %739 = vmatprep.subr.mxu0 0.0
        %740 = vmatpush1.xpose.msra.mxu0 0.0
        %741 = vmatprep.subr.mxu0 0.0
        %742 = vmatpush1.xpose.msra.mxu0 0.0
        %743 = vmatprep.subr.mxu0 0.0
        %744 = vmatpush1.xpose.msra.mxu0 0.0
        %745 = vmatprep.subr.mxu0 0.0
        %746 = vmatpush1.xpose.msra.mxu0 0.0
        %747 = vmatprep.subr.mxu0 0.0
        %748 = vmatpush1.xpose.msra.mxu0 0.0
        %749 = vmatprep.subr.mxu0 0.0
        %750 = vmatpush1.xpose.msra.mxu0 0.0
        %751 = vmatprep.subr.mxu0 0.0
        %752 = vmatpush1.xpose.msra.mxu0 0.0
        %753 = vmatprep.subr.mxu0 0.0
        %754 = vmatpush1.xpose.msra.mxu0 0.0
        %755 = vmatprep.subr.mxu0 0.0
        %756 = vmatpush1.xpose.msra.mxu0 0.0
        %757 = vmatprep.subr.mxu0 0.0
        %758 = vmatpush1.xpose.msra.mxu0 0.0
        %759 = vmatprep.subr.mxu0 0.0
        %760 = vmatpush1.xpose.msra.mxu0 0.0
        %761 = vmatprep.subr.mxu0 0.0
        %762 = vmatpush1.xpose.msra.mxu0 0.0
        %763 = vmatprep.subr.mxu0 0.0
        %764 = vmatpush1.xpose.msra.mxu0 0.0
        %765 = vmatprep.subr.mxu0 0.0
        %766 = vmatpush1.xpose.msra.mxu0 0.0
        %767 = vmatprep.mubr.f32.mxu0 0.0
        %768 = vmatmul.mubr.f32.gmra.mrb[0].mxu0 %v698
        %v769 = vpop.f32.mrb[0].mxu0
        %v770 = vadd.f32 0.0, %v769
        %v771 = vpop.f32.mrb[0].mxu0
        %772 = vdwg.mxu0
        %v773 = vmul.f32 %v770, 0.35355338
        %v774 = vsel %vm696, %v773, -inf
        %775 = vmax.xlane.f32.xlu0 %v774
        %v776 = vpop.xlane.xlu0 %775
        %v777 = vsub.f32 %v773, %v776
        %v778 = vmul.f32 %v777, 1.442695
        %v779 = vpow.pop %v778
        %v780 = vsel %vm696, %v779, 0.0
        %781 = vadd.xlane.f32.xlu0 %v780
        %v782 = vpop.xlane.xlu0 %781
        %v783 = vrcp.pop %v782
        %v784 = vmul.f32 %v779, %v783
        %785 = vst.msk [vmem:[%s460] sm:$0xff] %vm696, %v784
        %v787 = vsel %vm696, %v784, 0
        %789 = vmatprep.subr.mxu0 0.0
        %790 = vmatpush1.msra.mxu0 %v693
        %791 = vmatprep.subr.mxu0 0.0
        %792 = vmatpush1.msra.mxu0 0.0
        %793 = vmatprep.subr.mxu0 0.0
        %794 = vmatpush1.msra.mxu0 0.0
        %795 = vmatprep.subr.mxu0 0.0
        %796 = vmatpush1.msra.mxu0 0.0
        %797 = vmatprep.subr.mxu0 0.0
        %798 = vmatpush1.msra.mxu0 0.0
        %799 = vmatprep.subr.mxu0 0.0
        %800 = vmatpush1.msra.mxu0 0.0
        %801 = vmatprep.subr.mxu0 0.0
        %802 = vmatpush1.msra.mxu0 0.0
        %803 = vmatprep.subr.mxu0 0.0
        %804 = vmatpush1.msra.mxu0 0.0
        %805 = vmatprep.subr.mxu0 0.0
        %806 = vmatpush1.msra.mxu0 0.0
        %807 = vmatprep.subr.mxu0 0.0
        %808 = vmatpush1.msra.mxu0 0.0
        %809 = vmatprep.subr.mxu0 0.0
        %810 = vmatpush1.msra.mxu0 0.0
        %811 = vmatprep.subr.mxu0 0.0
        %812 = vmatpush1.msra.mxu0 0.0
        %813 = vmatprep.subr.mxu0 0.0
        %814 = vmatpush1.msra.mxu0 0.0
        %815 = vmatprep.subr.mxu0 0.0
        %816 = vmatpush1.msra.mxu0 0.0
        %817 = vmatprep.subr.mxu0 0.0
        %818 = vmatpush1.msra.mxu0 0.0
        %819 = vmatprep.subr.mxu0 0.0
        %820 = vmatpush1.msra.mxu0 0.0
        %821 = vmatprep.subr.mxu0 0.0
        %822 = vmatpush1.msra.mxu0 0.0
        %823 = vmatprep.subr.mxu0 0.0
        %824 = vmatpush1.msra.mxu0 0.0
        %825 = vmatprep.subr.mxu0 0.0
        %826 = vmatpush1.msra.mxu0 0.0
        %827 = vmatprep.subr.mxu0 0.0
        %828 = vmatpush1.msra.mxu0 0.0
        %829 = vmatprep.subr.mxu0 0.0
        %830 = vmatpush1.msra.mxu0 0.0
        %831 = vmatprep.subr.mxu0 0.0
        %832 = vmatpush1.msra.mxu0 0.0
        %833 = vmatprep.subr.mxu0 0.0
        %834 = vmatpush1.msra.mxu0 0.0
        %835 = vmatprep.subr.mxu0 0.0
        %836 = vmatpush1.msra.mxu0 0.0
        %837 = vmatprep.subr.mxu0 0.0
        %838 = vmatpush1.msra.mxu0 0.0
        %839 = vmatprep.subr.mxu0 0.0
        %840 = vmatpush1.msra.mxu0 0.0
        %841 = vmatprep.subr.mxu0 0.0
        %842 = vmatpush1.msra.mxu0 0.0
        %843 = vmatprep.subr.mxu0 0.0
        %844 = vmatpush1.msra.mxu0 0.0
        %845 = vmatprep.subr.mxu0 0.0
        %846 = vmatpush1.msra.mxu0 0.0
        %847 = vmatprep.subr.mxu0 0.0
        %848 = vmatpush1.msra.mxu0 0.0
        %849 = vmatprep.subr.mxu0 0.0
        %850 = vmatpush1.msra.mxu0 0.0
        %851 = vmatprep.subr.mxu0 0.0
        %852 = vmatpush1.msra.mxu0 0.0
        %853 = vmatprep.mubr.f32.mxu0 0.0
        %854 = vmatmul.mubr.f32.gmra.mrb[0].mxu0 %v787
        %v855 = vpop.f32.mrb[0].mxu0
        %v856 = vadd.f32 0.0, %v855
        %v857 = vpop.f32.mrb[0].mxu0
        %858 = vdwg.mxu0
        %859 = vrot.lane.b32.xlu0 %v539, 120
        %v860 = vpop.permute.xlu0 %859
        %861 = vrot.lane.b32.xlu0 %v616, 120
        %v862 = vpop.permute.xlu0 %861
        %v863 = vsel %vm696, %v860, 0
        %v865 = vsel %vm696, %v862, 0
        %867 = vmatprep.subr.mxu0 0.0
        %868 = vmatpush1.xpose.msra.mxu0 %v865
        %869 = vmatprep.subr.mxu0 0.0
        %870 = vmatpush1.xpose.msra.mxu0 0.0
        %871 = vmatprep.subr.mxu0 0.0
        %872 = vmatpush1.xpose.msra.mxu0 0.0
        %873 = vmatprep.subr.mxu0 0.0
        %874 = vmatpush1.xpose.msra.mxu0 0.0
        %875 = vmatprep.subr.mxu0 0.0
        %876 = vmatpush1.xpose.msra.mxu0 0.0
        %877 = vmatprep.subr.mxu0 0.0
        %878 = vmatpush1.xpose.msra.mxu0 0.0
        %879 = vmatprep.subr.mxu0 0.0
        %880 = vmatpush1.xpose.msra.mxu0 0.0
        %881 = vmatprep.subr.mxu0 0.0
        %882 = vmatpush1.xpose.msra.mxu0 0.0
        %883 = vmatprep.subr.mxu0 0.0
        %884 = vmatpush1.xpose.msra.mxu0 0.0
        %885 = vmatprep.subr.mxu0 0.0
        %886 = vmatpush1.xpose.msra.mxu0 0.0
        %887 = vmatprep.subr.mxu0 0.0
        %888 = vmatpush1.xpose.msra.mxu0 0.0
        %889 = vmatprep.subr.mxu0 0.0
        %890 = vmatpush1.xpose.msra.mxu0 0.0
        %891 = vmatprep.subr.mxu0 0.0
        %892 = vmatpush1.xpose.msra.mxu0 0.0
        %893 = vmatprep.subr.mxu0 0.0
        %894 = vmatpush1.xpose.msra.mxu0 0.0
        %895 = vmatprep.subr.mxu0 0.0
        %896 = vmatpush1.xpose.msra.mxu0 0.0
        %897 = vmatprep.subr.mxu0 0.0
        %898 = vmatpush1.xpose.msra.mxu0 0.0
        %899 = vmatprep.subr.mxu0 0.0
        %900 = vmatpush1.xpose.msra.mxu0 0.0
        %901 = vmatprep.subr.mxu0 0.0
        %902 = vmatpush1.xpose.msra.mxu0 0.0
        %903 = vmatprep.subr.mxu0 0.0
        %904 = vmatpush1.xpose.msra.mxu0 0.0
        %905 = vmatprep.subr.mxu0 0.0
        %906 = vmatpush1.xpose.msra.mxu0 0.0
        %907 = vmatprep.subr.mxu0 0.0
        %908 = vmatpush1.xpose.msra.mxu0 0.0
        %909 = vmatprep.subr.mxu0 0.0
        %910 = vmatpush1.xpose.msra.mxu0 0.0
        %911 = vmatprep.subr.mxu0 0.0
        %912 = vmatpush1.xpose.msra.mxu0 0.0
        %913 = vmatprep.subr.mxu0 0.0
        %914 = vmatpush1.xpose.msra.mxu0 0.0
        %915 = vmatprep.subr.mxu0 0.0
        %916 = vmatpush1.xpose.msra.mxu0 0.0
        %917 = vmatprep.subr.mxu0 0.0
        %918 = vmatpush1.xpose.msra.mxu0 0.0
        %919 = vmatprep.subr.mxu0 0.0
        %920 = vmatpush1.xpose.msra.mxu0 0.0
        %921 = vmatprep.subr.mxu0 0.0
        %922 = vmatpush1.xpose.msra.mxu0 0.0
        %923 = vmatprep.subr.mxu0 0.0
        %924 = vmatpush1.xpose.msra.mxu0 0.0
        %925 = vmatprep.subr.mxu0 0.0
        %926 = vmatpush1.xpose.msra.mxu0 0.0
        %927 = vmatprep.subr.mxu0 0.0
        %928 = vmatpush1.xpose.msra.mxu0 0.0
        %929 = vmatprep.subr.mxu0 0.0
        %930 = vmatpush1.xpose.msra.mxu0 0.0
        %931 = vmatprep.mubr.f32.mxu0 0.0
        %932 = vmatmul.mubr.f32.gmra.mrb[0].mxu0 %v863
        %v933 = vpop.f32.mrb[0].mxu0
        %v934 = vadd.f32 0.0, %v933
        %v935 = vpop.f32.mrb[0].mxu0
        %936 = vdwg.mxu0
        %v937 = vmul.f32 %v934, 0.35355338
        %v938 = vsel %vm696, %v937, -inf
        %939 = vmax.xlane.f32.xlu0 %v938
        %v940 = vpop.xlane.xlu0 %939
        %v941 = vsub.f32 %v937, %v940
        %v942 = vmul.f32 %v941, 1.442695
        %v943 = vpow.pop %v942
        %v944 = vsel %vm696, %v943, 0.0
        %945 = vadd.xlane.f32.xlu0 %v944
        %v946 = vpop.xlane.xlu0 %945
        %v947 = vrcp.pop %v946
        %v948 = vmul.f32 %v943, %v947
        %s949 = scalar_lea.vmem %s460, 8 [#allocation15]
        %950 = vst.msk [vmem:[%s949] sm:$0xff] %vm696, %v948
        %952 = vrot.lane.b32.xlu0 %v693, 120
        %v953 = vpop.permute.xlu0 %952
        %v956 = vsel %vm696, %v948, 0
        %958 = vmatprep.subr.mxu0 0.0
        %959 = vmatpush1.msra.mxu0 %v953
        %960 = vmatprep.subr.mxu0 0.0
        %961 = vmatpush1.msra.mxu0 0.0
        %962 = vmatprep.subr.mxu0 0.0
        %963 = vmatpush1.msra.mxu0 0.0
        %964 = vmatprep.subr.mxu0 0.0
        %965 = vmatpush1.msra.mxu0 0.0
        %966 = vmatprep.subr.mxu0 0.0
        %967 = vmatpush1.msra.mxu0 0.0
        %968 = vmatprep.subr.mxu0 0.0
        %969 = vmatpush1.msra.mxu0 0.0
        %970 = vmatprep.subr.mxu0 0.0
        %971 = vmatpush1.msra.mxu0 0.0
        %972 = vmatprep.subr.mxu0 0.0
        %973 = vmatpush1.msra.mxu0 0.0
        %974 = vmatprep.subr.mxu0 0.0
        %975 = vmatpush1.msra.mxu0 0.0
        %976 = vmatprep.subr.mxu0 0.0
        %977 = vmatpush1.msra.mxu0 0.0
        %978 = vmatprep.subr.mxu0 0.0
        %979 = vmatpush1.msra.mxu0 0.0
        %980 = vmatprep.subr.mxu0 0.0
        %981 = vmatpush1.msra.mxu0 0.0
        %982 = vmatprep.subr.mxu0 0.0
        %983 = vmatpush1.msra.mxu0 0.0
        %984 = vmatprep.subr.mxu0 0.0
        %985 = vmatpush1.msra.mxu0 0.0
        %986 = vmatprep.subr.mxu0 0.0
        %987 = vmatpush1.msra.mxu0 0.0
        %988 = vmatprep.subr.mxu0 0.0
        %989 = vmatpush1.msra.mxu0 0.0
        %990 = vmatprep.subr.mxu0 0.0
        %991 = vmatpush1.msra.mxu0 0.0
        %992 = vmatprep.subr.mxu0 0.0
        %993 = vmatpush1.msra.mxu0 0.0
        %994 = vmatprep.subr.mxu0 0.0
        %995 = vmatpush1.msra.mxu0 0.0
        %996 = vmatprep.subr.mxu0 0.0
        %997 = vmatpush1.msra.mxu0 0.0
        %998 = vmatprep.subr.mxu0 0.0
        %999 = vmatpush1.msra.mxu0 0.0
        %1000 = vmatprep.subr.mxu0 0.0
        %1001 = vmatpush1.msra.mxu0 0.0
        %1002 = vmatprep.subr.mxu0 0.0
        %1003 = vmatpush1.msra.mxu0 0.0
        %1004 = vmatprep.subr.mxu0 0.0
        %1005 = vmatpush1.msra.mxu0 0.0
        %1006 = vmatprep.subr.mxu0 0.0
        %1007 = vmatpush1.msra.mxu0 0.0
        %1008 = vmatprep.subr.mxu0 0.0
        %1009 = vmatpush1.msra.mxu0 0.0
        %1010 = vmatprep.subr.mxu0 0.0
        %1011 = vmatpush1.msra.mxu0 0.0
        %1012 = vmatprep.subr.mxu0 0.0
        %1013 = vmatpush1.msra.mxu0 0.0
        %1014 = vmatprep.subr.mxu0 0.0
        %1015 = vmatpush1.msra.mxu0 0.0
        %1016 = vmatprep.subr.mxu0 0.0
        %1017 = vmatpush1.msra.mxu0 0.0
        %1018 = vmatprep.subr.mxu0 0.0
        %1019 = vmatpush1.msra.mxu0 0.0
        %1020 = vmatprep.subr.mxu0 0.0
        %1021 = vmatpush1.msra.mxu0 0.0
        %1022 = vmatprep.mubr.f32.mxu0 0.0
        %1023 = vmatmul.mubr.f32.gmra.mrb[0].mxu0 %v956
        %v1024 = vpop.f32.mrb[0].mxu0
        %v1025 = vadd.f32 0.0, %v1024
        %v1026 = vpop.f32.mrb[0].mxu0
        %1027 = vdwg.mxu0
        %1028 = vrot.lane.b32.xlu0 %v539, 112
        %v1029 = vpop.permute.xlu0 %1028
        %1030 = vrot.lane.b32.xlu0 %v616, 112
        %v1031 = vpop.permute.xlu0 %1030
        %v1032 = vsel %vm696, %v1029, 0
        %v1034 = vsel %vm696, %v1031, 0
        %1036 = vmatprep.subr.mxu0 0.0
        %1037 = vmatpush1.xpose.msra.mxu0 %v1034
        %1038 = vmatprep.subr.mxu0 0.0
        %1039 = vmatpush1.xpose.msra.mxu0 0.0
        %1040 = vmatprep.subr.mxu0 0.0
        %1041 = vmatpush1.xpose.msra.mxu0 0.0
        %1042 = vmatprep.subr.mxu0 0.0
        %1043 = vmatpush1.xpose.msra.mxu0 0.0
        %1044 = vmatprep.subr.mxu0 0.0
        %1045 = vmatpush1.xpose.msra.mxu0 0.0
        %1046 = vmatprep.subr.mxu0 0.0
        %1047 = vmatpush1.xpose.msra.mxu0 0.0
        %1048 = vmatprep.subr.mxu0 0.0
        %1049 = vmatpush1.xpose.msra.mxu0 0.0
        %1050 = vmatprep.subr.mxu0 0.0
        %1051 = vmatpush1.xpose.msra.mxu0 0.0
        %1052 = vmatprep.subr.mxu0 0.0
        %1053 = vmatpush1.xpose.msra.mxu0 0.0
        %1054 = vmatprep.subr.mxu0 0.0
        %1055 = vmatpush1.xpose.msra.mxu0 0.0
        %1056 = vmatprep.subr.mxu0 0.0
        %1057 = vmatpush1.xpose.msra.mxu0 0.0
        %1058 = vmatprep.subr.mxu0 0.0
        %1059 = vmatpush1.xpose.msra.mxu0 0.0
        %1060 = vmatprep.subr.mxu0 0.0
        %1061 = vmatpush1.xpose.msra.mxu0 0.0
        %1062 = vmatprep.subr.mxu0 0.0
        %1063 = vmatpush1.xpose.msra.mxu0 0.0
        %1064 = vmatprep.subr.mxu0 0.0
        %1065 = vmatpush1.xpose.msra.mxu0 0.0
        %1066 = vmatprep.subr.mxu0 0.0
        %1067 = vmatpush1.xpose.msra.mxu0 0.0
        %1068 = vmatprep.subr.mxu0 0.0
        %1069 = vmatpush1.xpose.msra.mxu0 0.0
        %1070 = vmatprep.subr.mxu0 0.0
        %1071 = vmatpush1.xpose.msra.mxu0 0.0
        %1072 = vmatprep.subr.mxu0 0.0
        %1073 = vmatpush1.xpose.msra.mxu0 0.0
        %1074 = vmatprep.subr.mxu0 0.0
        %1075 = vmatpush1.xpose.msra.mxu0 0.0
        %1076 = vmatprep.subr.mxu0 0.0
        %1077 = vmatpush1.xpose.msra.mxu0 0.0
        %1078 = vmatprep.subr.mxu0 0.0
        %1079 = vmatpush1.xpose.msra.mxu0 0.0
        %1080 = vmatprep.subr.mxu0 0.0
        %1081 = vmatpush1.xpose.msra.mxu0 0.0
        %1082 = vmatprep.subr.mxu0 0.0
        %1083 = vmatpush1.xpose.msra.mxu0 0.0
        %1084 = vmatprep.subr.mxu0 0.0
        %1085 = vmatpush1.xpose.msra.mxu0 0.0
        %1086 = vmatprep.subr.mxu0 0.0
        %1087 = vmatpush1.xpose.msra.mxu0 0.0
        %1088 = vmatprep.subr.mxu0 0.0
        %1089 = vmatpush1.xpose.msra.mxu0 0.0
        %1090 = vmatprep.subr.mxu0 0.0
        %1091 = vmatpush1.xpose.msra.mxu0 0.0
        %1092 = vmatprep.subr.mxu0 0.0
        %1093 = vmatpush1.xpose.msra.mxu0 0.0
        %1094 = vmatprep.subr.mxu0 0.0
        %1095 = vmatpush1.xpose.msra.mxu0 0.0
        %1096 = vmatprep.subr.mxu0 0.0
        %1097 = vmatpush1.xpose.msra.mxu0 0.0
        %1098 = vmatprep.subr.mxu0 0.0
        %1099 = vmatpush1.xpose.msra.mxu0 0.0
        %1100 = vmatprep.mubr.f32.mxu0 0.0
        %1101 = vmatmul.mubr.f32.gmra.mrb[0].mxu0 %v1032
        %v1102 = vpop.f32.mrb[0].mxu0
        %v1103 = vadd.f32 0.0, %v1102
        %v1104 = vpop.f32.mrb[0].mxu0
        %1105 = vdwg.mxu0
        %v1106 = vmul.f32 %v1103, 0.35355338
        %v1107 = vsel %vm696, %v1106, -inf
        %1108 = vmax.xlane.f32.xlu0 %v1107
        %v1109 = vpop.xlane.xlu0 %1108
        %v1110 = vsub.f32 %v1106, %v1109
        %v1111 = vmul.f32 %v1110, 1.442695
        %v1112 = vpow.pop %v1111
        %v1113 = vsel %vm696, %v1112, 0.0
        %1114 = vadd.xlane.f32.xlu0 %v1113
        %v1115 = vpop.xlane.xlu0 %1114
        %v1116 = vrcp.pop %v1115
        %v1117 = vmul.f32 %v1112, %v1116
        %s1118 = scalar_lea.vmem %s460, 16 [#allocation15]
        %1119 = vst.msk [vmem:[%s1118] sm:$0xff] %vm696, %v1117
        %1120 = vrot.lane.b32.xlu0 %v693, 112
        %v1121 = vpop.permute.xlu0 %1120
        %v1124 = vsel %vm696, %v1117, 0
        %1126 = vmatprep.subr.mxu0 0.0
        %1127 = vmatpush1.msra.mxu0 %v1121
        %1128 = vmatprep.subr.mxu0 0.0
        %1129 = vmatpush1.msra.mxu0 0.0
        %1130 = vmatprep.subr.mxu0 0.0
        %1131 = vmatpush1.msra.mxu0 0.0
        %1132 = vmatprep.subr.mxu0 0.0
        %1133 = vmatpush1.msra.mxu0 0.0
        %1134 = vmatprep.subr.mxu0 0.0
        %1135 = vmatpush1.msra.mxu0 0.0
        %1136 = vmatprep.subr.mxu0 0.0
        %1137 = vmatpush1.msra.mxu0 0.0
        %1138 = vmatprep.subr.mxu0 0.0
        %1139 = vmatpush1.msra.mxu0 0.0
        %1140 = vmatprep.subr.mxu0 0.0
        %1141 = vmatpush1.msra.mxu0 0.0
        %1142 = vmatprep.subr.mxu0 0.0
        %1143 = vmatpush1.msra.mxu0 0.0
        %1144 = vmatprep.subr.mxu0 0.0
        %1145 = vmatpush1.msra.mxu0 0.0
        %1146 = vmatprep.subr.mxu0 0.0
        %1147 = vmatpush1.msra.mxu0 0.0
        %1148 = vmatprep.subr.mxu0 0.0
        %1149 = vmatpush1.msra.mxu0 0.0
        %1150 = vmatprep.subr.mxu0 0.0
        %1151 = vmatpush1.msra.mxu0 0.0
        %1152 = vmatprep.subr.mxu0 0.0
        %1153 = vmatpush1.msra.mxu0 0.0
        %1154 = vmatprep.subr.mxu0 0.0
        %1155 = vmatpush1.msra.mxu0 0.0
        %1156 = vmatprep.subr.mxu0 0.0
        %1157 = vmatpush1.msra.mxu0 0.0
        %1158 = vmatprep.subr.mxu0 0.0
        %1159 = vmatpush1.msra.mxu0 0.0
        %1160 = vmatprep.subr.mxu0 0.0
        %1161 = vmatpush1.msra.mxu0 0.0
        %1162 = vmatprep.subr.mxu0 0.0
        %1163 = vmatpush1.msra.mxu0 0.0
        %1164 = vmatprep.subr.mxu0 0.0
        %1165 = vmatpush1.msra.mxu0 0.0
        %1166 = vmatprep.subr.mxu0 0.0
        %1167 = vmatpush1.msra.mxu0 0.0
        %1168 = vmatprep.subr.mxu0 0.0
        %1169 = vmatpush1.msra.mxu0 0.0
        %1170 = vmatprep.subr.mxu0 0.0
        %1171 = vmatpush1.msra.mxu0 0.0
        %1172 = vmatprep.subr.mxu0 0.0
        %1173 = vmatpush1.msra.mxu0 0.0
        %1174 = vmatprep.subr.mxu0 0.0
        %1175 = vmatpush1.msra.mxu0 0.0
        %1176 = vmatprep.subr.mxu0 0.0
        %1177 = vmatpush1.msra.mxu0 0.0
        %1178 = vmatprep.subr.mxu0 0.0
        %1179 = vmatpush1.msra.mxu0 0.0
        %1180 = vmatprep.subr.mxu0 0.0
        %1181 = vmatpush1.msra.mxu0 0.0
        %1182 = vmatprep.subr.mxu0 0.0
        %1183 = vmatpush1.msra.mxu0 0.0
        %1184 = vmatprep.subr.mxu0 0.0
        %1185 = vmatpush1.msra.mxu0 0.0
        %1186 = vmatprep.subr.mxu0 0.0
        %1187 = vmatpush1.msra.mxu0 0.0
        %1188 = vmatprep.subr.mxu0 0.0
        %1189 = vmatpush1.msra.mxu0 0.0
        %1190 = vmatprep.mubr.f32.mxu0 0.0
        %1191 = vmatmul.mubr.f32.gmra.mrb[0].mxu0 %v1124
        %v1192 = vpop.f32.mrb[0].mxu0
        %v1193 = vadd.f32 0.0, %v1192
        %v1194 = vpop.f32.mrb[0].mxu0
        %1195 = vdwg.mxu0
        %1196 = vrot.lane.b32.xlu0 %v539, 104
        %v1197 = vpop.permute.xlu0 %1196
        %1198 = vrot.lane.b32.xlu0 %v616, 104
        %v1199 = vpop.permute.xlu0 %1198
        %v1200 = vsel %vm696, %v1197, 0
        %v1202 = vsel %vm696, %v1199, 0
        %1204 = vmatprep.subr.mxu0 0.0
        %1205 = vmatpush1.xpose.msra.mxu0 %v1202
        %1206 = vmatprep.subr.mxu0 0.0
        %1207 = vmatpush1.xpose.msra.mxu0 0.0
        %1208 = vmatprep.subr.mxu0 0.0
        %1209 = vmatpush1.xpose.msra.mxu0 0.0
        %1210 = vmatprep.subr.mxu0 0.0
        %1211 = vmatpush1.xpose.msra.mxu0 0.0
        %1212 = vmatprep.subr.mxu0 0.0
        %1213 = vmatpush1.xpose.msra.mxu0 0.0
        %1214 = vmatprep.subr.mxu0 0.0
        %1215 = vmatpush1.xpose.msra.mxu0 0.0
        %1216 = vmatprep.subr.mxu0 0.0
        %1217 = vmatpush1.xpose.msra.mxu0 0.0
        %1218 = vmatprep.subr.mxu0 0.0
        %1219 = vmatpush1.xpose.msra.mxu0 0.0
        %1220 = vmatprep.subr.mxu0 0.0
        %1221 = vmatpush1.xpose.msra.mxu0 0.0
        %1222 = vmatprep.subr.mxu0 0.0
        %1223 = vmatpush1.xpose.msra.mxu0 0.0
        %1224 = vmatprep.subr.mxu0 0.0
        %1225 = vmatpush1.xpose.msra.mxu0 0.0
        %1226 = vmatprep.subr.mxu0 0.0
        %1227 = vmatpush1.xpose.msra.mxu0 0.0
        %1228 = vmatprep.subr.mxu0 0.0
        %1229 = vmatpush1.xpose.msra.mxu0 0.0
        %1230 = vmatprep.subr.mxu0 0.0
        %1231 = vmatpush1.xpose.msra.mxu0 0.0
        %1232 = vmatprep.subr.mxu0 0.0
        %1233 = vmatpush1.xpose.msra.mxu0 0.0
        %1234 = vmatprep.subr.mxu0 0.0
        %1235 = vmatpush1.xpose.msra.mxu0 0.0
        %1236 = vmatprep.subr.mxu0 0.0
        %1237 = vmatpush1.xpose.msra.mxu0 0.0
        %1238 = vmatprep.subr.mxu0 0.0
        %1239 = vmatpush1.xpose.msra.mxu0 0.0
        %1240 = vmatprep.subr.mxu0 0.0
        %1241 = vmatpush1.xpose.msra.mxu0 0.0
        %1242 = vmatprep.subr.mxu0 0.0
        %1243 = vmatpush1.xpose.msra.mxu0 0.0
        %1244 = vmatprep.subr.mxu0 0.0
        %1245 = vmatpush1.xpose.msra.mxu0 0.0
        %1246 = vmatprep.subr.mxu0 0.0
        %1247 = vmatpush1.xpose.msra.mxu0 0.0
        %1248 = vmatprep.subr.mxu0 0.0
        %1249 = vmatpush1.xpose.msra.mxu0 0.0
        %1250 = vmatprep.subr.mxu0 0.0
        %1251 = vmatpush1.xpose.msra.mxu0 0.0
        %1252 = vmatprep.subr.mxu0 0.0
        %1253 = vmatpush1.xpose.msra.mxu0 0.0
        %1254 = vmatprep.subr.mxu0 0.0
        %1255 = vmatpush1.xpose.msra.mxu0 0.0
        %1256 = vmatprep.subr.mxu0 0.0
        %1257 = vmatpush1.xpose.msra.mxu0 0.0
        %1258 = vmatprep.subr.mxu0 0.0
        %1259 = vmatpush1.xpose.msra.mxu0 0.0
        %1260 = vmatprep.subr.mxu0 0.0
        %1261 = vmatpush1.xpose.msra.mxu0 0.0
        %1262 = vmatprep.subr.mxu0 0.0
        %1263 = vmatpush1.xpose.msra.mxu0 0.0
        %1264 = vmatprep.subr.mxu0 0.0
        %1265 = vmatpush1.xpose.msra.mxu0 0.0
        %1266 = vmatprep.subr.mxu0 0.0
        %1267 = vmatpush1.xpose.msra.mxu0 0.0
        %1268 = vmatprep.mubr.f32.mxu0 0.0
        %1269 = vmatmul.mubr.f32.gmra.mrb[0].mxu0 %v1200
        %v1270 = vpop.f32.mrb[0].mxu0
        %v1271 = vadd.f32 0.0, %v1270
        %v1272 = vpop.f32.mrb[0].mxu0
        %1273 = vdwg.mxu0
        %v1274 = vmul.f32 %v1271, 0.35355338
        %v1275 = vsel %vm696, %v1274, -inf
        %1276 = vmax.xlane.f32.xlu0 %v1275
        %v1277 = vpop.xlane.xlu0 %1276
        %v1278 = vsub.f32 %v1274, %v1277
        %v1279 = vmul.f32 %v1278, 1.442695
        %v1280 = vpow.pop %v1279
        %v1281 = vsel %vm696, %v1280, 0.0
        %1282 = vadd.xlane.f32.xlu0 %v1281
        %v1283 = vpop.xlane.xlu0 %1282
        %v1284 = vrcp.pop %v1283
        %v1285 = vmul.f32 %v1280, %v1284
        %s1286 = scalar_lea.vmem %s460, 24 [#allocation15]
        %1287 = vst.msk [vmem:[%s1286] sm:$0xff] %vm696, %v1285
        %1288 = vrot.lane.b32.xlu0 %v693, 104
        %v1289 = vpop.permute.xlu0 %1288
        %v1292 = vsel %vm696, %v1285, 0
        %1294 = vmatprep.subr.mxu0 0.0
        %1295 = vmatpush1.msra.mxu0 %v1289
        %1296 = vmatprep.subr.mxu0 0.0
        %1297 = vmatpush1.msra.mxu0 0.0
        %1298 = vmatprep.subr.mxu0 0.0
        %1299 = vmatpush1.msra.mxu0 0.0
        %1300 = vmatprep.subr.mxu0 0.0
        %1301 = vmatpush1.msra.mxu0 0.0
        %1302 = vmatprep.subr.mxu0 0.0
        %1303 = vmatpush1.msra.mxu0 0.0
        %1304 = vmatprep.subr.mxu0 0.0
        %1305 = vmatpush1.msra.mxu0 0.0
        %1306 = vmatprep.subr.mxu0 0.0
        %1307 = vmatpush1.msra.mxu0 0.0
        %1308 = vmatprep.subr.mxu0 0.0
        %1309 = vmatpush1.msra.mxu0 0.0
        %1310 = vmatprep.subr.mxu0 0.0
        %1311 = vmatpush1.msra.mxu0 0.0
        %1312 = vmatprep.subr.mxu0 0.0
        %1313 = vmatpush1.msra.mxu0 0.0
        %1314 = vmatprep.subr.mxu0 0.0
        %1315 = vmatpush1.msra.mxu0 0.0
        %1316 = vmatprep.subr.mxu0 0.0
        %1317 = vmatpush1.msra.mxu0 0.0
        %1318 = vmatprep.subr.mxu0 0.0
        %1319 = vmatpush1.msra.mxu0 0.0
        %1320 = vmatprep.subr.mxu0 0.0
        %1321 = vmatpush1.msra.mxu0 0.0
        %1322 = vmatprep.subr.mxu0 0.0
        %1323 = vmatpush1.msra.mxu0 0.0
        %1324 = vmatprep.subr.mxu0 0.0
        %1325 = vmatpush1.msra.mxu0 0.0
        %1326 = vmatprep.subr.mxu0 0.0
        %1327 = vmatpush1.msra.mxu0 0.0
        %1328 = vmatprep.subr.mxu0 0.0
        %1329 = vmatpush1.msra.mxu0 0.0
        %1330 = vmatprep.subr.mxu0 0.0
        %1331 = vmatpush1.msra.mxu0 0.0
        %1332 = vmatprep.subr.mxu0 0.0
        %1333 = vmatpush1.msra.mxu0 0.0
        %1334 = vmatprep.subr.mxu0 0.0
        %1335 = vmatpush1.msra.mxu0 0.0
        %1336 = vmatprep.subr.mxu0 0.0
        %1337 = vmatpush1.msra.mxu0 0.0
        %1338 = vmatprep.subr.mxu0 0.0
        %1339 = vmatpush1.msra.mxu0 0.0
        %1340 = vmatprep.subr.mxu0 0.0
        %1341 = vmatpush1.msra.mxu0 0.0
        %1342 = vmatprep.subr.mxu0 0.0
        %1343 = vmatpush1.msra.mxu0 0.0
        %1344 = vmatprep.subr.mxu0 0.0
        %1345 = vmatpush1.msra.mxu0 0.0
        %1346 = vmatprep.subr.mxu0 0.0
        %1347 = vmatpush1.msra.mxu0 0.0
        %1348 = vmatprep.subr.mxu0 0.0
        %1349 = vmatpush1.msra.mxu0 0.0
        %1350 = vmatprep.subr.mxu0 0.0
        %1351 = vmatpush1.msra.mxu0 0.0
        %1352 = vmatprep.subr.mxu0 0.0
        %1353 = vmatpush1.msra.mxu0 0.0
        %1354 = vmatprep.subr.mxu0 0.0
        %1355 = vmatpush1.msra.mxu0 0.0
        %1356 = vmatprep.subr.mxu0 0.0
        %1357 = vmatpush1.msra.mxu0 0.0
        %1358 = vmatprep.mubr.f32.mxu0 0.0
        %1359 = vmatmul.mubr.f32.gmra.mrb[0].mxu0 %v1292
        %v1360 = vpop.f32.mrb[0].mxu0
        %v1361 = vadd.f32 0.0, %v1360
        %v1362 = vpop.f32.mrb[0].mxu0
        %1363 = vdwg.mxu0
        %1365 = vrot.lane.b32.xlu0 %v1025, 8
        %v1366 = vpop.permute.xlu0 %1365
        %1369 = vrot.lane.b32.xlu0 %v1193, 16
        %v1370 = vpop.permute.xlu0 %1369
        %1373 = vrot.lane.b32.xlu0 %v1361, 24
        %v1374 = vpop.permute.xlu0 %1373
        %v1376 = vsel %vm696, %v856, %v1366
        %vm1377 = vcmask 130048
        %v1378 = vsel %vm1377, %v1376, %v1370
        %vm1379 = vcmask 195584
        %v1380 = vsel %vm1379, %v1378, %v1374
        %v1381 = vld [vmem:[#allocation13] sm:$0xff]
        %v1382 = vld [vmem:[#allocation13 + $0x8] sm:$0xff]
        %v1383 = vld [vmem:[#allocation13 + $0x10] sm:$0xff]
        %v1384 = vld [vmem:[#allocation13 + $0x18] sm:$0xff]
        %v1386 = vsel %vm468, %v1380, 0
        %v1389 = vsel %vm468, %v1381, 0
        %v1392 = vsel %vm468, %v1382, 0
        %v1395 = vsel %vm468, %v1383, 0
        %v1398 = vsel %vm468, %v1384, 0
        %1400 = vmatprep.subr.mxu0 0.0
        %1401 = vmatpush1.xpose.msra.mxu0 %v1389
        %1402 = vmatprep.subr.mxu0 0.0
        %1403 = vmatpush1.xpose.msra.mxu0 %v1392
        %1404 = vmatprep.subr.mxu0 0.0
        %1405 = vmatpush1.xpose.msra.mxu0 %v1395
        %1406 = vmatprep.subr.mxu0 0.0
        %1407 = vmatpush1.xpose.msra.mxu0 %v1398
        %1408 = vmatprep.subr.mxu0 0.0
        %1409 = vmatpush1.xpose.msra.mxu0 0.0
        %1410 = vmatprep.subr.mxu0 0.0
        %1411 = vmatpush1.xpose.msra.mxu0 0.0
        %1412 = vmatprep.subr.mxu0 0.0
        %1413 = vmatpush1.xpose.msra.mxu0 0.0
        %1414 = vmatprep.subr.mxu0 0.0
        %1415 = vmatpush1.xpose.msra.mxu0 0.0
        %1416 = vmatprep.subr.mxu0 0.0
        %1417 = vmatpush1.xpose.msra.mxu0 0.0
        %1418 = vmatprep.subr.mxu0 0.0
        %1419 = vmatpush1.xpose.msra.mxu0 0.0
        %1420 = vmatprep.subr.mxu0 0.0
        %1421 = vmatpush1.xpose.msra.mxu0 0.0
        %1422 = vmatprep.subr.mxu0 0.0
        %1423 = vmatpush1.xpose.msra.mxu0 0.0
        %1424 = vmatprep.subr.mxu0 0.0
        %1425 = vmatpush1.xpose.msra.mxu0 0.0
        %1426 = vmatprep.subr.mxu0 0.0
        %1427 = vmatpush1.xpose.msra.mxu0 0.0
        %1428 = vmatprep.subr.mxu0 0.0
        %1429 = vmatpush1.xpose.msra.mxu0 0.0
        %1430 = vmatprep.subr.mxu0 0.0
        %1431 = vmatpush1.xpose.msra.mxu0 0.0
        %1432 = vmatprep.subr.mxu0 0.0
        %1433 = vmatpush1.xpose.msra.mxu0 0.0
        %1434 = vmatprep.subr.mxu0 0.0
        %1435 = vmatpush1.xpose.msra.mxu0 0.0
        %1436 = vmatprep.subr.mxu0 0.0
        %1437 = vmatpush1.xpose.msra.mxu0 0.0
        %1438 = vmatprep.subr.mxu0 0.0
        %1439 = vmatpush1.xpose.msra.mxu0 0.0
        %1440 = vmatprep.subr.mxu0 0.0
        %1441 = vmatpush1.xpose.msra.mxu0 0.0
        %1442 = vmatprep.subr.mxu0 0.0
        %1443 = vmatpush1.xpose.msra.mxu0 0.0
        %1444 = vmatprep.subr.mxu0 0.0
        %1445 = vmatpush1.xpose.msra.mxu0 0.0
        %1446 = vmatprep.subr.mxu0 0.0
        %1447 = vmatpush1.xpose.msra.mxu0 0.0
        %1448 = vmatprep.subr.mxu0 0.0
        %1449 = vmatpush1.xpose.msra.mxu0 0.0
        %1450 = vmatprep.subr.mxu0 0.0
        %1451 = vmatpush1.xpose.msra.mxu0 0.0
        %1452 = vmatprep.subr.mxu0 0.0
        %1453 = vmatpush1.xpose.msra.mxu0 0.0
        %1454 = vmatprep.subr.mxu0 0.0
        %1455 = vmatpush1.xpose.msra.mxu0 0.0
        %1456 = vmatprep.subr.mxu0 0.0
        %1457 = vmatpush1.xpose.msra.mxu0 0.0
        %1458 = vmatprep.subr.mxu0 0.0
        %1459 = vmatpush1.xpose.msra.mxu0 0.0
        %1460 = vmatprep.subr.mxu0 0.0
        %1461 = vmatpush1.xpose.msra.mxu0 0.0
        %1462 = vmatprep.subr.mxu0 0.0
        %1463 = vmatpush1.xpose.msra.mxu0 0.0
        %1464 = vmatprep.mubr.f32.mxu0 0.0
        %1465 = vmatmul.mubr.f32.gmra.mrb[0].mxu0 %v1386
        %v1466 = vpop.f32.mrb[0].mxu0
        %v1467 = vadd.f32 %v461, %v1466
        %v1468 = vpop.f32.mrb[0].mxu0
        %1469 = vdwg.mxu0
        %v1470 = vsel %vm468, %v1467, 0.0
        %1471 = vadd.xlane.f32.xlu0 %v1470
        %v1472 = vpop.xlane.xlu0 %1471
        %v1473 = vrcp.pop 32.0
        %v1474 = vmul.f32 %v1472, %v1473
        %v1475 = vsub.f32 %v1467, %v1474
        %v1476 = vmul.f32 %v1475, %v1475
        %v1477 = vsel %vm468, %v1476, 0.0
        %1478 = vadd.xlane.f32.xlu0 %v1477
        %v1479 = vpop.xlane.xlu0 %1478
        %v1480 = vmul.f32 %v1479, %v1473
        %v1481 = vadd.f32 %v1480, 1e-05
        %v1482 = vrsqrt.pop %v1481
        %v1483 = vmul.f32 %v1475, %v1482
        %1484 = vst.msk [vmem:[%s453] sm:$0xff] %vm468, %v1483
        %s1485 = sand.u32 %s204, 1
        %s1486 = scalar_lea.sflag [#allocation4], %s1485
        %s1487 = sand.u32 %s204, 1
        %s1488 = smul.addr %s1487, 8
        %s1489 = scalar_lea.vmem [#allocation14], %s1488
        %s1490 = sand.u32 %s230, 1
        %s1491 = scalar_lea.sflag [#allocation16], %s1490
        %s1492 = sand.u32 %s230, 1
        %s1493 = smul.addr %s1492, 32
        %s1494 = scalar_lea.vmem [#allocation15], %s1493
        // Predicated region
        $region77: #{tpu_custom_call.1} parent=47 // pred_check
          %p1495 = pneg %p214
        $region78: #{tpu_custom_call.1} parent=47 // pred_check_branch
          %1497 = sbr.rel (%p1495) target = $region80
        $region79: #{tpu_custom_call.1} parent=47 // pred_region
          %s1499 = ssub.s32 128, 128
          %1500 = vsyncadd %s1486, %s1499
          %s1501 = smul.addr %s34, 128
          %s1502 = scalar_lea.hbm %s7, %s1501
          %s1504 = sshll.u32 %s1489, 4
          %s1505 = int_to_ptr.vmem [resolvable:$true] %s1504
          %1507 = dma.vmem_to_hbm [thread:$0]  %s1505, 128, %s1502, %s1486
        $region80: #{tpu_custom_call.1} parent=47 // pred_fallthru
          _
        // Predicated region
        $region81: #{tpu_custom_call.1} parent=47 // pred_check
          %p1508 = pneg %p240
        $region82: #{tpu_custom_call.1} parent=47 // pred_check_branch
          %1510 = sbr.rel (%p1508) target = $region84
        $region83: #{tpu_custom_call.1} parent=47 // pred_region
          %s1512 = ssub.s32 512, 512
          %1513 = vsyncadd %s1491, %s1512
          %s1514 = smul.addr %s34, 4
          %s1515 = smul.addr %s1514, 128
          %s1516 = scalar_lea.hbm %s8, %s1515
          %s1517 = sshll.u32 %s1494, 4
          %s1518 = int_to_ptr.vmem [resolvable:$true] %s1517
          %1523 = dma.vmem_to_hbm [thread:$0]  %s1518, 512, %s1516, %s1491, 128, 128, 8
        $region84: #{tpu_custom_call.1} parent=47 // pred_fallthru
          _
      $region48: #{tpu_custom_call.1} parent=5 // pred_fallthru
        _
      %p1524 = scmp.le.s32.totalorder 2, %s29
      // Predicated region
      $region85: #{tpu_custom_call.1} parent=5 // pred_check
        %p1525 = pneg %p1524
      $region86: #{tpu_custom_call.1} parent=5 // pred_check_branch
        %1527 = sbr.rel (%p1525) target = $region88
      $region87: #{tpu_custom_call.1} parent=5 // pred_region
        %s1528 = ssub.s32 %s29, 2
        // Predicated region
        $region89: #{tpu_custom_call.1} parent=87 // pred_check
          %p1529 = pneg %p220
        $region90: #{tpu_custom_call.1} parent=87 // pred_check_branch
          %1531 = sbr.rel (%p1529) target = $region92
        $region91: #{tpu_custom_call.1} parent=87 // pred_region
          %s1532 = sand.u32 %s205, 1
          %s1533 = scalar_lea.sflag [#allocation4], %s1532
          %s1534 = sand.u32 %s205, 1
          %s1535 = smul.addr %s1534, 8
          %s1536 = scalar_lea.vmem [#allocation14], %s1535
          %1537 = dma.done %s1533, 128
        $region92: #{tpu_custom_call.1} parent=87 // pred_fallthru
          _
        // Predicated region
        $region93: #{tpu_custom_call.1} parent=87 // pred_check
          %p1538 = pneg %p246
        $region94: #{tpu_custom_call.1} parent=87 // pred_check_branch
          %1540 = sbr.rel (%p1538) target = $region96
        $region95: #{tpu_custom_call.1} parent=87 // pred_region
          %s1541 = sand.u32 %s231, 1
          %s1542 = scalar_lea.sflag [#allocation16], %s1541
          %s1543 = sand.u32 %s231, 1
          %s1544 = smul.addr %s1543, 32
          %s1545 = scalar_lea.vmem [#allocation15], %s1544
          %1546 = dma.done %s1542, 512
        $region96: #{tpu_custom_call.1} parent=87 // pred_fallthru
          _
      $region88: #{tpu_custom_call.1} parent=5 // pred_fallthru
        _
    $region6: #{tpu_custom_call.1} parent=1 // loop_footer
      %s33 = sadd.s32 1, %s29
    $region7: #{tpu_custom_call.1} parent=1 // loop_footer_branch
      %28 = sbr.rel target = $region3
    $region8: #{tpu_custom_call.1} parent=1 // loop_exit
      _
    %1547 = vsyncpa [#allocation3], 1
    %s1548 = scalar_lea.sflag [#allocation3], 1
    %1549 = vsyncpa %s1548, 1
    %1550 = vsyncpa [#allocation6], 1
    %s1551 = scalar_lea.sflag [#allocation6], 1
    %1552 = vsyncpa %s1551, 1
    %1553 = vsyncpa [#allocation9], 1
    %1554 = vsyncpa [#allocation12], 1
    %1555 = vsyncpa [#allocation4], 1
    %s1556 = scalar_lea.sflag [#allocation4], 1
    %1557 = vsyncpa %s1556, 1
    %1558 = vsyncpa [#allocation16], 1
    %s1559 = scalar_lea.sflag [#allocation16], 1
    %1560 = vsyncpa %s1559, 1

</llo_original>
